<compile_context>
chip_gen: v7x
topology: tpu7x:2x2x1
jax: 0.10.0
libtpu: 0.0.40
codegen_flags: <defaults>
</compile_context>

<pallas_src>
import functools

import jax
import jax.numpy as jnp
from jax.experimental import pallas as pl
from jax.experimental.pallas import tpu as pltpu


def _round_up(x, m):
    return ((x + m - 1) // m) * m


def edge_block_kernel(s_ref, r_ref, e_ref, w1s_ref, w1r_ref, w1e_ref, b1_ref,
                      w2_ref, b2_ref, gamma_ref, beta_ref, out_ref):
    # Residual copy stays in the input dtype (f32 in the demo); only the MXU
    # operand is cast to bf16.
    e_res = e_ref[...]

    # Linear(3F -> H) as three accumulated MXU matmuls (bf16 operands, f32 acc).
    h = jnp.dot(s_ref[...], w1s_ref[...], preferred_element_type=jnp.float32)
    h = h + jnp.dot(r_ref[...], w1r_ref[...], preferred_element_type=jnp.float32)
    h = h + jnp.dot(e_res.astype(w1e_ref.dtype), w1e_ref[...],
                    preferred_element_type=jnp.float32)
    h = jnp.maximum(h + b1_ref[...], 0.0)                    # bias + ReLU (f32, VPU)

    # Linear(H -> F): bf16 operands, f32 accumulation.
    y = jnp.dot(h.astype(w2_ref.dtype), w2_ref[...],
                preferred_element_type=jnp.float32) + b2_ref[...]

    # LayerNorm over the true (unpadded) feature width, centered variance
    # (matches PyTorch LayerNorm's two-pass form).
    mean = jnp.mean(y, axis=-1, keepdims=True)
    c = y - mean
    var = jnp.mean(c * c, axis=-1, keepdims=True)
    y = c * jax.lax.rsqrt(var + 1e-5) * gamma_ref[...] + beta_ref[...]

    # Residual: edge_attr + net(collected).
    out_ref[...] = (e_res + y).astype(out_ref.dtype)


@functools.partial(jax.jit, static_argnames=("max_tile_e",))
def edge_block(node_attr, edge_index, edge_attr, params, *, max_tile_e=2048):
    """Returns (node_attr, new_edge_attr, edge_index) — mirrors Data(x, edge_attr, edge_index)."""
    # TODO(synk): move this gather into the kernel (scalar-prefetched edge_index
    # + VMEM-resident node table) when N*F_node fits the per-generation VMEM budget.
    senders = jnp.take(node_attr, edge_index[0], axis=0)
    receivers = jnp.take(node_attr, edge_index[1], axis=0)

    E, F_edge = edge_attr.shape
    F_node = node_attr.shape[1]
    H = params["b1"].shape[-1]
    K = 2 * F_node + F_edge

    # Row tile: as large as allowed (amortizes ~0.35 us/grid-step overhead),
    # multiple of 8, but capped so the grid keeps >= 2 steps (v7x megacore).
    half = _round_up(pl.cdiv(E, 2), 8)
    tile_e = max(8, min(max_tile_e, half))
    E_pad = _round_up(E, tile_e)
    pad_rows = E_pad - E

    # Row-pad only; feature widths are NOT padded in HBM (no 4x byte inflation;
    # the narrow output just takes masked vector stores, which are cheap here).
    if pad_rows:
        s_in = jnp.pad(senders, ((0, pad_rows), (0, 0))).astype(jnp.bfloat16)
        r_in = jnp.pad(receivers, ((0, pad_rows), (0, 0))).astype(jnp.bfloat16)
        e_in = jnp.pad(edge_attr, ((0, pad_rows), (0, 0)))
    else:
        s_in = senders.astype(jnp.bfloat16)
        r_in = receivers.astype(jnp.bfloat16)
        e_in = edge_attr

    # Weights are resident (constant block index); bf16 operands for the MXU.
    w1s = params["w1s"].astype(jnp.bfloat16)
    w1r = params["w1r"].astype(jnp.bfloat16)
    w1e = params["w1e"].astype(jnp.bfloat16)
    w2 = params["w2"].astype(jnp.bfloat16)
    b1, b2 = params["b1"], params["b2"]
    gamma, beta = params["gamma"], params["beta"]

    grid = (E_pad // tile_e,)

    def rows(w):
        return pl.BlockSpec((tile_e, w), lambda i: (i, 0))

    def full(shape):
        return pl.BlockSpec(shape, lambda i: (0, 0))

    # VMEM budget (conservative: lane dim rounded to 128 for internal layout).
    def _lanes(n):
        return _round_up(n, 128)
    fn_l, fe_l, h_l = _lanes(F_node), _lanes(F_edge), _lanes(H)
    vmem_need = (
        2 * tile_e * (2 * fn_l * 2 + fe_l * 4)        # double-buffered input row tiles
        + 2 * tile_e * fe_l * 4                       # double-buffered output row tile
        + 2 * (2 * fn_l + fe_l) * h_l * 2             # W1 blocks (bf16), 2 bufs
        + 2 * h_l * fe_l * 2                          # W2 (bf16), 2 bufs
        + 2 * 8 * (h_l + 3 * fe_l) * 4                # bias / affine rows
        + tile_e * (h_l + fe_l) * 4                   # h / y intermediates
    )
    try:
        vmem_cap = int(pltpu.get_tpu_info().vmem_capacity_bytes)
    except Exception:
        vmem_cap = 64 << 20
    # Never request the full physical VMEM (v7x has only 64 MiB): keep ~25% headroom.
    vmem_limit = int(min(int(0.75 * vmem_cap), max(32 << 20, 2 * vmem_need)))

    # Cost estimate: lets XLA schedule the producer gather and consumer slice well.
    itemsize = edge_attr.dtype.itemsize
    flops = 2 * E_pad * (K * H + H * F_edge)
    bytes_accessed = int(
        E_pad * (2 * F_node * 2 + 2 * F_edge * itemsize)       # streams in + out
        + ((2 * F_node + F_edge) * H + H * F_edge) * 2          # bf16 weights
        + (H + 3 * F_edge) * 4)                                  # bias / affine
    cost = pl.CostEstimate(flops=flops, transcendentals=E_pad,
                           bytes_accessed=bytes_accessed)

    out_pad = pl.pallas_call(
        edge_block_kernel,
        out_shape=jax.ShapeDtypeStruct((E_pad, F_edge), edge_attr.dtype),
        grid_spec=pltpu.PrefetchScalarGridSpec(
            num_scalar_prefetch=0,
            grid=grid,
            in_specs=[
                rows(F_node),            # senders (bf16)
                rows(F_node),            # receivers (bf16)
                rows(F_edge),            # edge_attr (residual dtype, e.g. f32)
                full((F_node, H)),       # W1_senders (bf16)
                full((F_node, H)),       # W1_receivers (bf16)
                full((F_edge, H)),       # W1_edge (bf16)
                full((1, H)),            # b1
                full((H, F_edge)),       # W2 (bf16)
                full((1, F_edge)),       # b2
                full((1, F_edge)),       # LayerNorm gamma
                full((1, F_edge)),       # LayerNorm beta
            ],
            out_specs=rows(F_edge),
        ),
        input_output_aliases={2: 0},     # new edge_attr overwrites the residual buffer
        compiler_params=pltpu.CompilerParams(
            dimension_semantics=("parallel",),
            vmem_limit_bytes=vmem_limit),
        cost_estimate=cost,
    )(s_in, r_in, e_in, w1s, w1r, w1e, b1, w2, b2, gamma, beta)

    # TODO(synk): thread padded row counts through stacked Edge/Node blocks so this
    # slice (an extra E*F HBM round trip) disappears; it is already a no-op when
    # E is a multiple of the tile.
    new_edge_attr = out_pad if pad_rows == 0 else out_pad[:E]
    return node_attr, new_edge_attr, edge_index


def init_params(key, f_node, f_edge, hidden):
    ks = jax.random.split(key, 4)
    scale1 = 1.0 / jnp.sqrt(2 * f_node + f_edge)
    scale2 = 1.0 / jnp.sqrt(hidden)
    return {
        "w1s": scale1 * jax.random.normal(ks[0], (f_node, hidden), jnp.float32),
        "w1r": scale1 * jax.random.normal(ks[1], (f_node, hidden), jnp.float32),
        "w1e": scale1 * jax.random.normal(ks[2], (f_edge, hidden), jnp.float32),
        "b1": jnp.zeros((1, hidden), jnp.float32),
        "w2": scale2 * jax.random.normal(ks[3], (hidden, f_edge), jnp.float32),
        "b2": jnp.zeros((1, f_edge), jnp.float32),
        "gamma": jnp.ones((1, f_edge), jnp.float32),
        "beta": jnp.zeros((1, f_edge), jnp.float32),
    }


def reference(node_attr, edge_index, edge_attr, params):
    """Pure-JAX reference with the same numerics as the kernel:
    bf16 matmul operands, f32 accumulation / LayerNorm / residual.
    (bf16 MXU operands are a deliberate precision choice vs. an all-f32 module.)"""
    s = jnp.take(node_attr, edge_index[0], axis=0).astype(jnp.bfloat16)
    r = jnp.take(node_attr, edge_index[1], axis=0).astype(jnp.bfloat16)
    e = edge_attr.astype(jnp.bfloat16)
    h = (jnp.dot(s, params["w1s"].astype(jnp.bfloat16), preferred_element_type=jnp.float32)
         + jnp.dot(r, params["w1r"].astype(jnp.bfloat16), preferred_element_type=jnp.float32)
         + jnp.dot(e, params["w1e"].astype(jnp.bfloat16), preferred_element_type=jnp.float32)
         + params["b1"])
    h = jnp.maximum(h, 0.0)
    y = jnp.dot(h.astype(jnp.bfloat16), params["w2"].astype(jnp.bfloat16),
                preferred_element_type=jnp.float32) + params["b2"]
    mean = jnp.mean(y, axis=-1, keepdims=True)
    c = y - mean
    var = jnp.mean(c * c, axis=-1, keepdims=True)
    y = c * jax.lax.rsqrt(var + 1e-5) * params["gamma"] + params["beta"]
    return edge_attr + y


if __name__ == "__main__":
    key = jax.random.PRNGKey(0)
    k_node, k_edge, k_idx, k_param = jax.random.split(key, 4)

    # Small demo shapes; E deliberately NOT a multiple of 8 so the padded-tail
    # and 2-step "parallel" grid paths are exercised.
    N, E = 24, 200
    F_NODE, F_EDGE, HID = 32, 32, 64

    node_attr = jax.random.normal(k_node, (N, F_NODE), jnp.float32)
    edge_attr = jax.random.normal(k_edge, (E, F_EDGE), jnp.float32)
    edge_index = jax.random.randint(k_idx, (2, E), 0, N, dtype=jnp.int32)
    params = init_params(k_param, F_NODE, F_EDGE, HID)

    x_out, edge_out, idx_out = edge_block(node_attr, edge_index, edge_attr, params)
    edge_out = jax.block_until_ready(edge_out)

    ref = reference(node_attr, edge_index, edge_attr, params)
    assert x_out.shape == (N, F_NODE) and edge_out.shape == (E, F_EDGE)
    assert jnp.allclose(edge_out, ref, atol=5e-3, rtol=5e-3), (
        "max abs diff: %f" % float(jnp.max(jnp.abs(edge_out - ref))))

    print("KERNEL_OK")
</pallas_src>

<mosaic_0001>
module attributes {stable_mosaic.version = 11 : i64} {
  func.func @edge_block_kernel(%arg0: i32, %arg1: memref<104x32xbf16, #tpu.memory_space<vmem>>, %arg2: memref<104x32xbf16, #tpu.memory_space<vmem>>, %arg3: memref<104x32xf32, #tpu.memory_space<vmem>>, %arg4: memref<32x64xbf16, #tpu.memory_space<vmem>>, %arg5: memref<32x64xbf16, #tpu.memory_space<vmem>>, %arg6: memref<32x64xbf16, #tpu.memory_space<vmem>>, %arg7: memref<1x64xf32, #tpu.memory_space<vmem>>, %arg8: memref<64x32xbf16, #tpu.memory_space<vmem>>, %arg9: memref<1x32xf32, #tpu.memory_space<vmem>>, %arg10: memref<1x32xf32, #tpu.memory_space<vmem>>, %arg11: memref<1x32xf32, #tpu.memory_space<vmem>>, %arg12: memref<104x32xf32, #tpu.memory_space<vmem>>) attributes {dimension_semantics = [#tpu.dimension_semantics<parallel>], iteration_bounds = array<i64: 2>, scalar_prefetch = 0 : i64, scratch_operands = 0 : i64, tpu.core_type = #tpu.core_type<tc>, window_params = [{transform_indices = @transform_0, window_bounds = array<i64: 104, 32>}, {transform_indices = @transform_1, window_bounds = array<i64: 104, 32>}, {transform_indices = @transform_2, window_bounds = array<i64: 104, 32>}, {pipeline_mode = #tpu.pipeline_mode<synchronous>, transform_indices = @transform_3, window_bounds = array<i64: 32, 64>}, {pipeline_mode = #tpu.pipeline_mode<synchronous>, transform_indices = @transform_4, window_bounds = array<i64: 32, 64>}, {pipeline_mode = #tpu.pipeline_mode<synchronous>, transform_indices = @transform_5, window_bounds = array<i64: 32, 64>}, {pipeline_mode = #tpu.pipeline_mode<synchronous>, transform_indices = @transform_6, window_bounds = array<i64: 1, 64>}, {pipeline_mode = #tpu.pipeline_mode<synchronous>, transform_indices = @transform_7, window_bounds = array<i64: 64, 32>}, {pipeline_mode = #tpu.pipeline_mode<synchronous>, transform_indices = @transform_8, window_bounds = array<i64: 1, 32>}, {pipeline_mode = #tpu.pipeline_mode<synchronous>, transform_indices = @transform_9, window_bounds = array<i64: 1, 32>}, {pipeline_mode = #tpu.pipeline_mode<synchronous>, transform_indices = @transform_10, window_bounds = array<i64: 1, 32>}, {transform_indices = @transform_11, window_bounds = array<i64: 104, 32>}]} {
    %c0 = arith.constant 0 : index
    %c0_0 = arith.constant 0 : index
    %0 = vector.load %arg3[%c0, %c0_0] : memref<104x32xf32, #tpu.memory_space<vmem>>, vector<104x32xf32>
    %c0_1 = arith.constant 0 : index
    %c0_2 = arith.constant 0 : index
    %1 = vector.load %arg1[%c0_1, %c0_2] : memref<104x32xbf16, #tpu.memory_space<vmem>>, vector<104x32xbf16>
    %c0_3 = arith.constant 0 : index
    %c0_4 = arith.constant 0 : index
    %2 = vector.load %arg4[%c0_3, %c0_4] : memref<32x64xbf16, #tpu.memory_space<vmem>>, vector<32x64xbf16>
    %cst = arith.constant dense<0.000000e+00> : vector<104x64xf32>
    %3 = tpu.matmul %1, %2, %cst {dimension_numbers = #tpu.dot_dimension_numbers<[1], [0], [0], [1], [0, 0, 1, 1], [], []>} : vector<104x32xbf16>, vector<32x64xbf16>, vector<104x64xf32> -> vector<104x64xf32>
    %c0_5 = arith.constant 0 : index
    %c0_6 = arith.constant 0 : index
    %4 = vector.load %arg2[%c0_5, %c0_6] : memref<104x32xbf16, #tpu.memory_space<vmem>>, vector<104x32xbf16>
    %c0_7 = arith.constant 0 : index
    %c0_8 = arith.constant 0 : index
    %5 = vector.load %arg5[%c0_7, %c0_8] : memref<32x64xbf16, #tpu.memory_space<vmem>>, vector<32x64xbf16>
    %cst_9 = arith.constant dense<0.000000e+00> : vector<104x64xf32>
    %6 = tpu.matmul %4, %5, %cst_9 {dimension_numbers = #tpu.dot_dimension_numbers<[1], [0], [0], [1], [0, 0, 1, 1], [], []>} : vector<104x32xbf16>, vector<32x64xbf16>, vector<104x64xf32> -> vector<104x64xf32>
    %7 = arith.addf %3, %6 : vector<104x64xf32>
    %8 = arith.truncf %0 : vector<104x32xf32> to vector<104x32xbf16>
    %c0_10 = arith.constant 0 : index
    %c0_11 = arith.constant 0 : index
    %9 = vector.load %arg6[%c0_10, %c0_11] : memref<32x64xbf16, #tpu.memory_space<vmem>>, vector<32x64xbf16>
    %cst_12 = arith.constant dense<0.000000e+00> : vector<104x64xf32>
    %10 = tpu.matmul %8, %9, %cst_12 {dimension_numbers = #tpu.dot_dimension_numbers<[1], [0], [0], [1], [0, 0, 1, 1], [], []>} : vector<104x32xbf16>, vector<32x64xbf16>, vector<104x64xf32> -> vector<104x64xf32>
    %11 = arith.addf %7, %10 : vector<104x64xf32>
    %c0_13 = arith.constant 0 : index
    %c0_14 = arith.constant 0 : index
    %12 = vector.load %arg7[%c0_13, %c0_14] : memref<1x64xf32, #tpu.memory_space<vmem>>, vector<1x64xf32>
    %13 = vector.broadcast %12 : vector<1x64xf32> to vector<104x64xf32>
    %14 = arith.addf %11, %13 : vector<104x64xf32>
    %cst_15 = arith.constant 0.000000e+00 : f32
    %15 = vector.broadcast %cst_15 : f32 to vector<104x64xf32>
    %16 = arith.maximumf %14, %15 : vector<104x64xf32>
    %17 = arith.truncf %16 : vector<104x64xf32> to vector<104x64xbf16>
    %c0_16 = arith.constant 0 : index
    %c0_17 = arith.constant 0 : index
    %18 = vector.load %arg8[%c0_16, %c0_17] : memref<64x32xbf16, #tpu.memory_space<vmem>>, vector<64x32xbf16>
    %cst_18 = arith.constant dense<0.000000e+00> : vector<104x32xf32>
    %19 = tpu.matmul %17, %18, %cst_18 {dimension_numbers = #tpu.dot_dimension_numbers<[1], [0], [0], [1], [0, 0, 1, 1], [], []>} : vector<104x64xbf16>, vector<64x32xbf16>, vector<104x32xf32> -> vector<104x32xf32>
    %c0_19 = arith.constant 0 : index
    %c0_20 = arith.constant 0 : index
    %20 = vector.load %arg9[%c0_19, %c0_20] : memref<1x32xf32, #tpu.memory_space<vmem>>, vector<1x32xf32>
    %21 = vector.broadcast %20 : vector<1x32xf32> to vector<104x32xf32>
    %22 = arith.addf %19, %21 : vector<104x32xf32>
    %cst_21 = arith.constant dense<0.000000e+00> : vector<104xf32>
    %23 = vector.multi_reduction <add>, %22, %cst_21 [1] : vector<104x32xf32> to vector<104xf32>
    %24 = vector.shape_cast %23 : vector<104xf32> to vector<104x1xf32>
    %cst_22 = arith.constant 3.200000e+01 : f32
    %25 = vector.broadcast %cst_22 : f32 to vector<104x1xf32>
    %26 = arith.divf %24, %25 : vector<104x1xf32>
    %27 = vector.broadcast %26 : vector<104x1xf32> to vector<104x32xf32>
    %28 = arith.subf %22, %27 : vector<104x32xf32>
    %29 = arith.mulf %28, %28 : vector<104x32xf32>
    %cst_23 = arith.constant dense<0.000000e+00> : vector<104xf32>
    %30 = vector.multi_reduction <add>, %29, %cst_23 [1] : vector<104x32xf32> to vector<104xf32>
    %31 = vector.shape_cast %30 : vector<104xf32> to vector<104x1xf32>
    %cst_24 = arith.constant 3.200000e+01 : f32
    %32 = vector.broadcast %cst_24 : f32 to vector<104x1xf32>
    %33 = arith.divf %31, %32 : vector<104x1xf32>
    %cst_25 = arith.constant 9.99999974E-6 : f32
    %34 = vector.broadcast %cst_25 : f32 to vector<104x1xf32>
    %35 = arith.addf %33, %34 : vector<104x1xf32>
    %36 = math.rsqrt %35 : vector<104x1xf32>
    %37 = vector.broadcast %36 : vector<104x1xf32> to vector<104x32xf32>
    %38 = arith.mulf %28, %37 : vector<104x32xf32>
    %c0_26 = arith.constant 0 : index
    %c0_27 = arith.constant 0 : index
    %39 = vector.load %arg10[%c0_26, %c0_27] : memref<1x32xf32, #tpu.memory_space<vmem>>, vector<1x32xf32>
    %40 = vector.broadcast %39 : vector<1x32xf32> to vector<104x32xf32>
    %41 = arith.mulf %38, %40 : vector<104x32xf32>
    %c0_28 = arith.constant 0 : index
    %c0_29 = arith.constant 0 : index
    %42 = vector.load %arg11[%c0_28, %c0_29] : memref<1x32xf32, #tpu.memory_space<vmem>>, vector<1x32xf32>
    %43 = vector.broadcast %42 : vector<1x32xf32> to vector<104x32xf32>
    %44 = arith.addf %41, %43 : vector<104x32xf32>
    %45 = arith.addf %0, %44 : vector<104x32xf32>
    %c0_30 = arith.constant 0 : index
    %c0_31 = arith.constant 0 : index
    %46 = vector.load %arg12[%c0_30, %c0_31] : memref<104x32xf32, #tpu.memory_space<vmem>>, vector<104x32xf32>
    tpu.vector_store %arg12[%c0_30, %c0_31], %45 {strides = array<i32>} : memref<104x32xf32, #tpu.memory_space<vmem>>, vector<104x32xf32>,
    return
  }
  func.func @transform_0(%arg0: i32) -> (i32, i32) {
    %c0_i32 = arith.constant 0 : i32
    %c0_i32_0 = arith.constant 0 : i32
    return %arg0, %c0_i32 : i32, i32
  }
  func.func @transform_1(%arg0: i32) -> (i32, i32) {
    %c0_i32 = arith.constant 0 : i32
    %c0_i32_0 = arith.constant 0 : i32
    return %arg0, %c0_i32 : i32, i32
  }
  func.func @transform_2(%arg0: i32) -> (i32, i32) {
    %c0_i32 = arith.constant 0 : i32
    %c0_i32_0 = arith.constant 0 : i32
    return %arg0, %c0_i32 : i32, i32
  }
  func.func @transform_3(%arg0: i32) -> (i32, i32) {
    %c0_i32 = arith.constant 0 : i32
    %c0_i32_0 = arith.constant 0 : i32
    %c0_i32_1 = arith.constant 0 : i32
    return %c0_i32, %c0_i32_0 : i32, i32
  }
  func.func @transform_4(%arg0: i32) -> (i32, i32) {
    %c0_i32 = arith.constant 0 : i32
    %c0_i32_0 = arith.constant 0 : i32
    %c0_i32_1 = arith.constant 0 : i32
    return %c0_i32, %c0_i32_0 : i32, i32
  }
  func.func @transform_5(%arg0: i32) -> (i32, i32) {
    %c0_i32 = arith.constant 0 : i32
    %c0_i32_0 = arith.constant 0 : i32
    %c0_i32_1 = arith.constant 0 : i32
    return %c0_i32, %c0_i32_0 : i32, i32
  }
  func.func @transform_6(%arg0: i32) -> (i32, i32) {
    %c0_i32 = arith.constant 0 : i32
    %c0_i32_0 = arith.constant 0 : i32
    %c0_i32_1 = arith.constant 0 : i32
    return %c0_i32, %c0_i32_0 : i32, i32
  }
  func.func @transform_7(%arg0: i32) -> (i32, i32) {
    %c0_i32 = arith.constant 0 : i32
    %c0_i32_0 = arith.constant 0 : i32
    %c0_i32_1 = arith.constant 0 : i32
    return %c0_i32, %c0_i32_0 : i32, i32
  }
  func.func @transform_8(%arg0: i32) -> (i32, i32) {
    %c0_i32 = arith.constant 0 : i32
    %c0_i32_0 = arith.constant 0 : i32
    %c0_i32_1 = arith.constant 0 : i32
    return %c0_i32, %c0_i32_0 : i32, i32
  }
  func.func @transform_9(%arg0: i32) -> (i32, i32) {
    %c0_i32 = arith.constant 0 : i32
    %c0_i32_0 = arith.constant 0 : i32
    %c0_i32_1 = arith.constant 0 : i32
    return %c0_i32, %c0_i32_0 : i32, i32
  }
  func.func @transform_10(%arg0: i32) -> (i32, i32) {
    %c0_i32 = arith.constant 0 : i32
    %c0_i32_0 = arith.constant 0 : i32
    %c0_i32_1 = arith.constant 0 : i32
    return %c0_i32, %c0_i32_0 : i32, i32
  }
  func.func @transform_11(%arg0: i32) -> (i32, i32) {
    %c0_i32 = arith.constant 0 : i32
    %c0_i32_0 = arith.constant 0 : i32
    return %arg0, %c0_i32 : i32, i32
  }
}

</mosaic_0001>

<llo_original>
// kernel: edge_block.1
$region0: #{edge_block.1}
  #allocation0 [shape = 'u32[]', space=smem, size = 0x4, offset = 0x4, fixed_abs, tag = 'smem constant byte address 0x4 - core index']
  #allocation1 [shape = 'u32[144,128]{1,0:T(1,128)}', space=vmem, size = 0x12000, scoped, tag = 'internal scratch']
  %s0 = inlined_call_operand.vmem [shape: bf16[208,32], index: 0, kind: input, shape index: {}]
  %s1 = inlined_call_operand.vmem [shape: bf16[208,32], index: 1, kind: input, shape index: {}]
  %s2 = inlined_call_operand.vmem [shape: f32[208,32], index: 2, kind: input, shape index: {}, may-alias: {2,11}]
  %s3 = inlined_call_operand.vmem [shape: bf16[32,64], index: 3, kind: input, shape index: {}]
  %s4 = inlined_call_operand.vmem [shape: bf16[32,64], index: 4, kind: input, shape index: {}]
  %s5 = inlined_call_operand.vmem [shape: bf16[32,64], index: 5, kind: input, shape index: {}]
  %s6 = inlined_call_operand.vmem [shape: f32[1,64], index: 6, kind: input, shape index: {}]
  %s7 = inlined_call_operand.vmem [shape: bf16[64,32], index: 7, kind: input, shape index: {}]
  %s8 = inlined_call_operand.vmem [shape: f32[1,32], index: 8, kind: input, shape index: {}]
  %s9 = inlined_call_operand.vmem [shape: f32[1,32], index: 9, kind: input, shape index: {}]
  %s10 = inlined_call_operand.vmem [shape: f32[1,32], index: 10, kind: input, shape index: {}]
  %s11 = inlined_call_operand.vmem [shape: f32[208,32], index: 11, kind: output, shape index: {}, may-alias: {2,11}]
  %s12 = sld [smem:[#allocation0]]
  $region77: #{edge_block.1} parent=0
    _
  %s14 = ssub.s32 1, %s12
  %s15 = scalar_select 0, %s14, %s12
  loop: start=0, step=1, limit=4
  $region2: #{edge_block.1} parent=0 // loop_pre_header
    _
  $region3: #{edge_block.1} parent=0 // loop_header
    %s17 = sphi 0, %s21
    %p18 = scmp.ge.s32.totalorder %s17, 4
    %s27 = sphi 0, %s29
    %s30 = sphi 0, %s27
    %s31 = sphi 0, %s30
    %s47 = sphi 0, %s31
    %s53 = sphi 0, %s55
    %s56 = sphi 0, %s53
    %s57 = sphi 0, %s56
    %s73 = sphi 0, %s57
    %s79 = sphi 0, %s81
    %s82 = sphi 0, %s79
    %s83 = sphi 0, %s82
    %s99 = sphi 0, %s83
    %s103 = sphi 0, %s103
    %s105 = sphi 0, %s103
    %s106 = sphi 0, %s105
    %s120 = sphi 0, %s106
    %s124 = sphi 0, %s124
    %s126 = sphi 0, %s124
    %s127 = sphi 0, %s126
    %s141 = sphi 0, %s127
    %s145 = sphi 0, %s145
    %s147 = sphi 0, %s145
    %s148 = sphi 0, %s147
    %s162 = sphi 0, %s148
    %s166 = sphi 0, %s166
    %s168 = sphi 0, %s166
    %s169 = sphi 0, %s168
    %s183 = sphi 0, %s169
    %s187 = sphi 0, %s187
    %s189 = sphi 0, %s187
    %s190 = sphi 0, %s189
    %s204 = sphi 0, %s190
    %s208 = sphi 0, %s208
    %s210 = sphi 0, %s208
    %s211 = sphi 0, %s210
    %s225 = sphi 0, %s211
    %s229 = sphi 0, %s229
    %s231 = sphi 0, %s229
    %s232 = sphi 0, %s231
    %s246 = sphi 0, %s232
    %s250 = sphi 0, %s250
    %s252 = sphi 0, %s250
    %s253 = sphi 0, %s252
    %s267 = sphi 0, %s253
    %s273 = sphi 0, %s275
    %s276 = sphi 0, %s273
    %s277 = sphi 0, %s276
    %s293 = sphi 0, %s277
  $region4: #{edge_block.1} parent=0 // loop_header_branch
    %20 = sbr.rel (%p18) target = $region8
  $region5: #{edge_block.1} parent=0 // loop_body
    %s22 = ssub.s32 %s17, 1
    %s23 = ssub.s32 %s17, 2
    %s24 = sadd.s32 %s17, 1
    %s25 = ssub.s32 %s17, %s24
    %p26 = scmp.eq.s32.totalorder %s25, 0
    %s28 = sadd.s32 %s27, 1
    %s29 = scalar_select %p26, %s27, %s28
    %p32 = pneg %p26
    %p33 = scmp.eq.s32.totalorder %s17, 1
    %p34 = por %p32, %p33
    %p35 = scmp.ne.s32.totalorder %s27, %s30
    %p36 = scmp.eq.s32.totalorder %s17, 0
    %p37 = por %p35, %p36
    %p38 = scmp.ne.s32.totalorder %s27, %s30
    %p39 = scmp.eq.s32.totalorder %s22, 1
    %p40 = por %p38, %p39
    %p41 = scmp.ne.s32.totalorder %s30, %s31
    %p42 = scmp.eq.s32.totalorder %s22, 0
    %p43 = por %p41, %p42
    %p44 = scmp.ne.s32.totalorder %s30, %s31
    %p45 = scmp.eq.s32.totalorder %s23, 1
    %p46 = por %p44, %p45
    %p48 = scmp.ne.s32.totalorder %s31, %s47
    %p49 = scmp.eq.s32.totalorder %s23, 0
    %p50 = por %p48, %p49
    %s51 = ssub.s32 %s17, %s24
    %p52 = scmp.eq.s32.totalorder %s51, 0
    %s54 = sadd.s32 %s53, 1
    %s55 = scalar_select %p52, %s53, %s54
    %p58 = pneg %p52
    %p59 = scmp.eq.s32.totalorder %s17, 1
    %p60 = por %p58, %p59
    %p61 = scmp.ne.s32.totalorder %s53, %s56
    %p62 = scmp.eq.s32.totalorder %s17, 0
    %p63 = por %p61, %p62
    %p64 = scmp.ne.s32.totalorder %s53, %s56
    %p65 = scmp.eq.s32.totalorder %s22, 1
    %p66 = por %p64, %p65
    %p67 = scmp.ne.s32.totalorder %s56, %s57
    %p68 = scmp.eq.s32.totalorder %s22, 0
    %p69 = por %p67, %p68
    %p70 = scmp.ne.s32.totalorder %s56, %s57
    %p71 = scmp.eq.s32.totalorder %s23, 1
    %p72 = por %p70, %p71
    %p74 = scmp.ne.s32.totalorder %s57, %s73
    %p75 = scmp.eq.s32.totalorder %s23, 0
    %p76 = por %p74, %p75
    %s77 = ssub.s32 %s17, %s24
    %p78 = scmp.eq.s32.totalorder %s77, 0
    %s80 = sadd.s32 %s79, 1
    %s81 = scalar_select %p78, %s79, %s80
    %p84 = pneg %p78
    %p85 = scmp.eq.s32.totalorder %s17, 1
    %p86 = por %p84, %p85
    %p87 = scmp.ne.s32.totalorder %s79, %s82
    %p88 = scmp.eq.s32.totalorder %s17, 0
    %p89 = por %p87, %p88
    %p90 = scmp.ne.s32.totalorder %s79, %s82
    %p91 = scmp.eq.s32.totalorder %s22, 1
    %p92 = por %p90, %p91
    %p93 = scmp.ne.s32.totalorder %s82, %s83
    %p94 = scmp.eq.s32.totalorder %s22, 0
    %p95 = por %p93, %p94
    %p96 = scmp.ne.s32.totalorder %s82, %s83
    %p97 = scmp.eq.s32.totalorder %s23, 1
    %p98 = por %p96, %p97
    %p100 = scmp.ne.s32.totalorder %s83, %s99
    %p101 = scmp.eq.s32.totalorder %s23, 0
    %p102 = por %p100, %p101
    %s104 = sadd.s32 %s103, 1
    %p107 = scmp.eq.s32.totalorder %s17, 1
    %p108 = scmp.ne.s32.totalorder %s103, %s105
    %p109 = scmp.eq.s32.totalorder %s17, 0
    %p110 = por %p108, %p109
    %p111 = scmp.ne.s32.totalorder %s103, %s105
    %p112 = scmp.eq.s32.totalorder %s22, 1
    %p113 = por %p111, %p112
    %p114 = scmp.ne.s32.totalorder %s105, %s106
    %p115 = scmp.eq.s32.totalorder %s22, 0
    %p116 = por %p114, %p115
    %p117 = scmp.ne.s32.totalorder %s105, %s106
    %p118 = scmp.eq.s32.totalorder %s23, 1
    %p119 = por %p117, %p118
    %p121 = scmp.ne.s32.totalorder %s106, %s120
    %p122 = scmp.eq.s32.totalorder %s23, 0
    %p123 = por %p121, %p122
    %s125 = sadd.s32 %s124, 1
    %p128 = scmp.eq.s32.totalorder %s17, 1
    %p129 = scmp.ne.s32.totalorder %s124, %s126
    %p130 = scmp.eq.s32.totalorder %s17, 0
    %p131 = por %p129, %p130
    %p132 = scmp.ne.s32.totalorder %s124, %s126
    %p133 = scmp.eq.s32.totalorder %s22, 1
    %p134 = por %p132, %p133
    %p135 = scmp.ne.s32.totalorder %s126, %s127
    %p136 = scmp.eq.s32.totalorder %s22, 0
    %p137 = por %p135, %p136
    %p138 = scmp.ne.s32.totalorder %s126, %s127
    %p139 = scmp.eq.s32.totalorder %s23, 1
    %p140 = por %p138, %p139
    %p142 = scmp.ne.s32.totalorder %s127, %s141
    %p143 = scmp.eq.s32.totalorder %s23, 0
    %p144 = por %p142, %p143
    %s146 = sadd.s32 %s145, 1
    %p149 = scmp.eq.s32.totalorder %s17, 1
    %p150 = scmp.ne.s32.totalorder %s145, %s147
    %p151 = scmp.eq.s32.totalorder %s17, 0
    %p152 = por %p150, %p151
    %p153 = scmp.ne.s32.totalorder %s145, %s147
    %p154 = scmp.eq.s32.totalorder %s22, 1
    %p155 = por %p153, %p154
    %p156 = scmp.ne.s32.totalorder %s147, %s148
    %p157 = scmp.eq.s32.totalorder %s22, 0
    %p158 = por %p156, %p157
    %p159 = scmp.ne.s32.totalorder %s147, %s148
    %p160 = scmp.eq.s32.totalorder %s23, 1
    %p161 = por %p159, %p160
    %p163 = scmp.ne.s32.totalorder %s148, %s162
    %p164 = scmp.eq.s32.totalorder %s23, 0
    %p165 = por %p163, %p164
    %s167 = sadd.s32 %s166, 1
    %p170 = scmp.eq.s32.totalorder %s17, 1
    %p171 = scmp.ne.s32.totalorder %s166, %s168
    %p172 = scmp.eq.s32.totalorder %s17, 0
    %p173 = por %p171, %p172
    %p174 = scmp.ne.s32.totalorder %s166, %s168
    %p175 = scmp.eq.s32.totalorder %s22, 1
    %p176 = por %p174, %p175
    %p177 = scmp.ne.s32.totalorder %s168, %s169
    %p178 = scmp.eq.s32.totalorder %s22, 0
    %p179 = por %p177, %p178
    %p180 = scmp.ne.s32.totalorder %s168, %s169
    %p181 = scmp.eq.s32.totalorder %s23, 1
    %p182 = por %p180, %p181
    %p184 = scmp.ne.s32.totalorder %s169, %s183
    %p185 = scmp.eq.s32.totalorder %s23, 0
    %p186 = por %p184, %p185
    %s188 = sadd.s32 %s187, 1
    %p191 = scmp.eq.s32.totalorder %s17, 1
    %p192 = scmp.ne.s32.totalorder %s187, %s189
    %p193 = scmp.eq.s32.totalorder %s17, 0
    %p194 = por %p192, %p193
    %p195 = scmp.ne.s32.totalorder %s187, %s189
    %p196 = scmp.eq.s32.totalorder %s22, 1
    %p197 = por %p195, %p196
    %p198 = scmp.ne.s32.totalorder %s189, %s190
    %p199 = scmp.eq.s32.totalorder %s22, 0
    %p200 = por %p198, %p199
    %p201 = scmp.ne.s32.totalorder %s189, %s190
    %p202 = scmp.eq.s32.totalorder %s23, 1
    %p203 = por %p201, %p202
    %p205 = scmp.ne.s32.totalorder %s190, %s204
    %p206 = scmp.eq.s32.totalorder %s23, 0
    %p207 = por %p205, %p206
    %s209 = sadd.s32 %s208, 1
    %p212 = scmp.eq.s32.totalorder %s17, 1
    %p213 = scmp.ne.s32.totalorder %s208, %s210
    %p214 = scmp.eq.s32.totalorder %s17, 0
    %p215 = por %p213, %p214
    %p216 = scmp.ne.s32.totalorder %s208, %s210
    %p217 = scmp.eq.s32.totalorder %s22, 1
    %p218 = por %p216, %p217
    %p219 = scmp.ne.s32.totalorder %s210, %s211
    %p220 = scmp.eq.s32.totalorder %s22, 0
    %p221 = por %p219, %p220
    %p222 = scmp.ne.s32.totalorder %s210, %s211
    %p223 = scmp.eq.s32.totalorder %s23, 1
    %p224 = por %p222, %p223
    %p226 = scmp.ne.s32.totalorder %s211, %s225
    %p227 = scmp.eq.s32.totalorder %s23, 0
    %p228 = por %p226, %p227
    %s230 = sadd.s32 %s229, 1
    %p233 = scmp.eq.s32.totalorder %s17, 1
    %p234 = scmp.ne.s32.totalorder %s229, %s231
    %p235 = scmp.eq.s32.totalorder %s17, 0
    %p236 = por %p234, %p235
    %p237 = scmp.ne.s32.totalorder %s229, %s231
    %p238 = scmp.eq.s32.totalorder %s22, 1
    %p239 = por %p237, %p238
    %p240 = scmp.ne.s32.totalorder %s231, %s232
    %p241 = scmp.eq.s32.totalorder %s22, 0
    %p242 = por %p240, %p241
    %p243 = scmp.ne.s32.totalorder %s231, %s232
    %p244 = scmp.eq.s32.totalorder %s23, 1
    %p245 = por %p243, %p244
    %p247 = scmp.ne.s32.totalorder %s232, %s246
    %p248 = scmp.eq.s32.totalorder %s23, 0
    %p249 = por %p247, %p248
    %s251 = sadd.s32 %s250, 1
    %p254 = scmp.eq.s32.totalorder %s17, 1
    %p255 = scmp.ne.s32.totalorder %s250, %s252
    %p256 = scmp.eq.s32.totalorder %s17, 0
    %p257 = por %p255, %p256
    %p258 = scmp.ne.s32.totalorder %s250, %s252
    %p259 = scmp.eq.s32.totalorder %s22, 1
    %p260 = por %p258, %p259
    %p261 = scmp.ne.s32.totalorder %s252, %s253
    %p262 = scmp.eq.s32.totalorder %s22, 0
    %p263 = por %p261, %p262
    %p264 = scmp.ne.s32.totalorder %s252, %s253
    %p265 = scmp.eq.s32.totalorder %s23, 1
    %p266 = por %p264, %p265
    %p268 = scmp.ne.s32.totalorder %s253, %s267
    %p269 = scmp.eq.s32.totalorder %s23, 0
    %p270 = por %p268, %p269
    %s271 = ssub.s32 %s17, %s24
    %p272 = scmp.eq.s32.totalorder %s271, 0
    %s274 = sadd.s32 %s273, 1
    %s275 = scalar_select %p272, %s273, %s274
    %p278 = pneg %p272
    %p279 = scmp.eq.s32.totalorder %s17, 1
    %p280 = por %p278, %p279
    %p281 = scmp.ne.s32.totalorder %s273, %s276
    %p282 = scmp.eq.s32.totalorder %s17, 0
    %p283 = por %p281, %p282
    %p284 = scmp.ne.s32.totalorder %s273, %s276
    %p285 = scmp.eq.s32.totalorder %s22, 1
    %p286 = por %p284, %p285
    %p287 = scmp.ne.s32.totalorder %s276, %s277
    %p288 = scmp.eq.s32.totalorder %s22, 0
    %p289 = por %p287, %p288
    %p290 = scmp.ne.s32.totalorder %s276, %s277
    %p291 = scmp.eq.s32.totalorder %s23, 1
    %p292 = por %p290, %p291
    %p294 = scmp.ne.s32.totalorder %s277, %s293
    %p295 = scmp.eq.s32.totalorder %s23, 0
    %p296 = por %p294, %p295
    %p297 = scmp.le.s32.totalorder 1, %s17
    %p298 = scmp.lt.s32.totalorder %s17, 3
    %p299 = pnand %p297, %p298
    %p300 = pneg %p299
    // Predicated region
    $region9: #{edge_block.1} parent=5 // pred_check
      _
    $region10: #{edge_block.1} parent=5 // pred_check_branch
      %302 = sbr.rel (%p299) target = $region12
    $region11: #{edge_block.1} parent=5 // pred_region
      %s303 = ssub.s32 %s17, 1
      // Predicated region
      $region13: #{edge_block.1} parent=11 // pred_check
        %p304 = pneg %p116
      $region14: #{edge_block.1} parent=11 // pred_check_branch
        %306 = sbr.rel (%p304) target = $region16
      $region15: #{edge_block.1} parent=11 // pred_region
        _
      $region16: #{edge_block.1} parent=11 // pred_fallthru
        _
      // Predicated region
      $region17: #{edge_block.1} parent=11 // pred_check
        %p307 = pneg %p137
      $region18: #{edge_block.1} parent=11 // pred_check_branch
        %309 = sbr.rel (%p307) target = $region20
      $region19: #{edge_block.1} parent=11 // pred_region
        _
      $region20: #{edge_block.1} parent=11 // pred_fallthru
        _
      // Predicated region
      $region21: #{edge_block.1} parent=11 // pred_check
        %p310 = pneg %p158
      $region22: #{edge_block.1} parent=11 // pred_check_branch
        %312 = sbr.rel (%p310) target = $region24
      $region23: #{edge_block.1} parent=11 // pred_region
        _
      $region24: #{edge_block.1} parent=11 // pred_fallthru
        _
      // Predicated region
      $region25: #{edge_block.1} parent=11 // pred_check
        %p313 = pneg %p179
      $region26: #{edge_block.1} parent=11 // pred_check_branch
        %315 = sbr.rel (%p313) target = $region28
      $region27: #{edge_block.1} parent=11 // pred_region
        _
      $region28: #{edge_block.1} parent=11 // pred_fallthru
        _
      // Predicated region
      $region29: #{edge_block.1} parent=11 // pred_check
        %p316 = pneg %p200
      $region30: #{edge_block.1} parent=11 // pred_check_branch
        %318 = sbr.rel (%p316) target = $region32
      $region31: #{edge_block.1} parent=11 // pred_region
        _
      $region32: #{edge_block.1} parent=11 // pred_fallthru
        _
      // Predicated region
      $region33: #{edge_block.1} parent=11 // pred_check
        %p319 = pneg %p221
      $region34: #{edge_block.1} parent=11 // pred_check_branch
        %321 = sbr.rel (%p319) target = $region36
      $region35: #{edge_block.1} parent=11 // pred_region
        _
      $region36: #{edge_block.1} parent=11 // pred_fallthru
        _
      // Predicated region
      $region37: #{edge_block.1} parent=11 // pred_check
        %p322 = pneg %p242
      $region38: #{edge_block.1} parent=11 // pred_check_branch
        %324 = sbr.rel (%p322) target = $region40
      $region39: #{edge_block.1} parent=11 // pred_region
        _
      $region40: #{edge_block.1} parent=11 // pred_fallthru
        _
      // Predicated region
      $region41: #{edge_block.1} parent=11 // pred_check
        %p325 = pneg %p263
      $region42: #{edge_block.1} parent=11 // pred_check_branch
        %327 = sbr.rel (%p325) target = $region44
      $region43: #{edge_block.1} parent=11 // pred_region
        _
      $region44: #{edge_block.1} parent=11 // pred_fallthru
        _
    $region12: #{edge_block.1} parent=5 // pred_fallthru
      _
    %p328 = scmp.lt.s32.totalorder %s17, 2
    // Predicated region
    $region45: #{edge_block.1} parent=5 // pred_check
      %p329 = pneg %p328
    $region46: #{edge_block.1} parent=5 // pred_check_branch
      %331 = sbr.rel (%p329) target = $region48
    $region47: #{edge_block.1} parent=5 // pred_region
      // Predicated region
      $region49: #{edge_block.1} parent=47 // pred_check
        %p332 = pneg %p37
      $region50: #{edge_block.1} parent=47 // pred_check_branch
        %334 = sbr.rel (%p332) target = $region52
      $region51: #{edge_block.1} parent=47 // pred_region
        %s335 = smul.u32 13, %s17
        %p336 = scmp.lt.s32.totalorder %s335, 25
        %s337 = scalar_select %p336, %s335, 25
        %s338 = smul.addr %s337, 4
        %s339 = scalar_lea.vmem %s0, %s338
        %s340 = smul.u32 13, %s17
      $region52: #{edge_block.1} parent=47 // pred_fallthru
        _
      // Predicated region
      $region53: #{edge_block.1} parent=47 // pred_check
        %p341 = pneg %p63
      $region54: #{edge_block.1} parent=47 // pred_check_branch
        %343 = sbr.rel (%p341) target = $region56
      $region55: #{edge_block.1} parent=47 // pred_region
        %s344 = smul.u32 13, %s17
        %p345 = scmp.lt.s32.totalorder %s344, 25
        %s346 = scalar_select %p345, %s344, 25
        %s347 = smul.addr %s346, 4
        %s348 = scalar_lea.vmem %s1, %s347
        %s349 = smul.u32 13, %s17
      $region56: #{edge_block.1} parent=47 // pred_fallthru
        _
      // Predicated region
      $region57: #{edge_block.1} parent=47 // pred_check
        %p350 = pneg %p89
      $region58: #{edge_block.1} parent=47 // pred_check_branch
        %352 = sbr.rel (%p350) target = $region60
      $region59: #{edge_block.1} parent=47 // pred_region
        %s353 = smul.u32 13, %s17
        %p354 = scmp.lt.s32.totalorder %s353, 25
        %s355 = scalar_select %p354, %s353, 25
        %s356 = smul.addr %s355, 8
        %s357 = scalar_lea.vmem %s2, %s356
        %s358 = smul.u32 13, %s17
      $region60: #{edge_block.1} parent=47 // pred_fallthru
        _
    $region48: #{edge_block.1} parent=5 // pred_fallthru
      _
    %p359 = scmp.le.s32.totalorder 1, %s17
    %p360 = scmp.lt.s32.totalorder %s17, 3
    %p361 = pnand %p359, %p360
    %p362 = pneg %p361
    // Predicated region
    $region61: #{edge_block.1} parent=5 // pred_check
      _
    $region62: #{edge_block.1} parent=5 // pred_check_branch
      %364 = sbr.rel (%p361) target = $region64
    $region63: #{edge_block.1} parent=5 // pred_region
      %s365 = ssub.s32 %s17, 1
      %s366 = smul.u32 13, %s22
      %p367 = scmp.lt.s32.totalorder %s366, 25
      %s368 = scalar_select %p367, %s366, 25
      %s369 = smul.addr %s368, 4
      %s370 = scalar_lea.vmem %s0, %s369
      %p371 = pneg %p43
      %p372 = pneg %p40
      %s373 = smul.u32 13, %s22
      %p374 = scmp.lt.s32.totalorder %s373, 25
      %s375 = scalar_select %p374, %s373, 25
      %s376 = smul.addr %s375, 4
      %s377 = scalar_lea.vmem %s1, %s376
      %p378 = pneg %p69
      %p379 = pneg %p66
      %s380 = smul.u32 13, %s22
      %p381 = scmp.lt.s32.totalorder %s380, 25
      %s382 = scalar_select %p381, %s380, 25
      %s383 = smul.addr %s382, 8
      %s384 = scalar_lea.vmem %s2, %s383
      %p385 = pneg %p95
      %p386 = pneg %p92
      %p387 = pneg %p116
      %p388 = pneg %p113
      %p389 = pneg %p137
      %p390 = pneg %p134
      %p391 = pneg %p158
      %p392 = pneg %p155
      %p393 = pneg %p179
      %p394 = pneg %p176
      %p395 = pneg %p200
      %p396 = pneg %p197
      %p397 = pneg %p221
      %p398 = pneg %p218
      %p399 = pneg %p242
      %p400 = pneg %p239
      %p401 = pneg %p263
      %p402 = pneg %p260
      %p403 = pneg %p289
      %p404 = pneg %p286
      %s405 = smul.u32 13, %s22
      %p406 = scmp.lt.s32.totalorder %s405, 25
      %s407 = scalar_select %p406, %s405, 25
      %s408 = smul.addr %s407, 8
      %s409 = scalar_lea.vmem %s11, %s408
      %s410 = smul.u32 13, %s22
      %p411 = scmp.lt.s32.totalorder %s410, 25
      %s412 = scalar_select %p411, %s410, 25
      %s413 = smul.addr %s412, 4
      %s414 = scalar_lea.vmem %s0, %s413
      %s415 = smul.u32 13, %s22
      %s416 = smul.u32 13, %s22
      %p417 = scmp.lt.s32.totalorder %s416, 25
      %s418 = scalar_select %p417, %s416, 25
      %s419 = smul.addr %s418, 4
      %s420 = scalar_lea.vmem %s1, %s419
      %s421 = smul.u32 13, %s22
      %s422 = smul.u32 13, %s22
      %p423 = scmp.lt.s32.totalorder %s422, 25
      %s424 = scalar_select %p423, %s422, 25
      %s425 = smul.addr %s424, 8
      %s426 = scalar_lea.vmem %s2, %s425
      %s427 = smul.u32 13, %s22
      %s428 = smul.u32 13, %s22
      %p429 = scmp.lt.s32.totalorder %s428, 25
      %s430 = scalar_select %p429, %s428, 25
      %s431 = smul.addr %s430, 8
      %s432 = scalar_lea.vmem %s11, %s431
      %s433 = smul.u32 13, %s22
      %v435 = vld [vmem:[%s426] sm:$0xff]
      %v436 = vld [vmem:[%s426 + $0x8] sm:$0xff]
      %v437 = vld [vmem:[%s426 + $0x10] sm:$0xff]
      %v438 = vld [vmem:[%s426 + $0x18] sm:$0xff]
      %v439 = vld [vmem:[%s426 + $0x20] sm:$0xff]
      %v440 = vld [vmem:[%s426 + $0x28] sm:$0xff]
      %v441 = vld [vmem:[%s426 + $0x30] sm:$0xff]
      %v442 = vld [vmem:[%s426 + $0x38] sm:$0xff]
      %v443 = vld [vmem:[%s426 + $0x40] sm:$0xff]
      %v444 = vld [vmem:[%s426 + $0x48] sm:$0xff]
      %v445 = vld [vmem:[%s426 + $0x50] sm:$0xff]
      %v446 = vld [vmem:[%s426 + $0x58] sm:$0xff]
      %v447 = vld [vmem:[%s426 + $0x60] sm:$0xff]
      %v448 = vld [vmem:[%s414] sm:$0xf]
      %v449 = vld [vmem:[%s414 + $0x4] sm:$0xf]
      %v450 = vld [vmem:[%s414 + $0x8] sm:$0xf]
      %v451 = vld [vmem:[%s414 + $0xc] sm:$0xf]
      %v452 = vld [vmem:[%s414 + $0x10] sm:$0xf]
      %v453 = vld [vmem:[%s414 + $0x14] sm:$0xf]
      %v454 = vld [vmem:[%s414 + $0x18] sm:$0xf]
      %v455 = vld [vmem:[%s414 + $0x1c] sm:$0xf]
      %v456 = vld [vmem:[%s414 + $0x20] sm:$0xf]
      %v457 = vld [vmem:[%s414 + $0x24] sm:$0xf]
      %v458 = vld [vmem:[%s414 + $0x28] sm:$0xf]
      %v459 = vld [vmem:[%s414 + $0x2c] sm:$0xf]
      %v460 = vld [vmem:[%s414 + $0x30] sm:$0xf]
      %v461 = vld [vmem:[%s3] sm:$0xf]
      %v462 = vld [vmem:[%s3 + $0x4] sm:$0xf]
      %v463 = vld [vmem:[%s3 + $0x8] sm:$0xf]
      %v464 = vld [vmem:[%s3 + $0xc] sm:$0xf]
      %v465 = vld [vmem:[%s420] sm:$0xf]
      %v466 = vld [vmem:[%s420 + $0x4] sm:$0xf]
      %v467 = vld [vmem:[%s420 + $0x8] sm:$0xf]
      %v468 = vld [vmem:[%s420 + $0xc] sm:$0xf]
      %v469 = vld [vmem:[%s420 + $0x10] sm:$0xf]
      %v470 = vld [vmem:[%s420 + $0x14] sm:$0xf]
      %v471 = vld [vmem:[%s420 + $0x18] sm:$0xf]
      %v472 = vld [vmem:[%s420 + $0x1c] sm:$0xf]
      %v473 = vld [vmem:[%s420 + $0x20] sm:$0xf]
      %v474 = vld [vmem:[%s420 + $0x24] sm:$0xf]
      %v475 = vld [vmem:[%s420 + $0x28] sm:$0xf]
      %v476 = vld [vmem:[%s420 + $0x2c] sm:$0xf]
      %v477 = vld [vmem:[%s420 + $0x30] sm:$0xf]
      %v478 = vld [vmem:[%s4] sm:$0xf]
      %v479 = vld [vmem:[%s4 + $0x4] sm:$0xf]
      %v480 = vld [vmem:[%s4 + $0x8] sm:$0xf]
      %v481 = vld [vmem:[%s4 + $0xc] sm:$0xf]
      %v495 = vunpack.c.l.b16 %v465
      %v496 = vunpack.c.l.b16 %v466
      %v497 = vunpack.c.l.b16 %v467
      %v498 = vunpack.c.l.b16 %v468
      %v499 = vunpack.c.l.b16 %v469
      %v500 = vunpack.c.l.b16 %v470
      %v501 = vunpack.c.l.b16 %v471
      %v502 = vunpack.c.l.b16 %v472
      %v503 = vunpack.c.l.b16 %v473
      %v504 = vunpack.c.l.b16 %v474
      %v505 = vunpack.c.l.b16 %v475
      %v506 = vunpack.c.l.b16 %v476
      %v507 = vunpack.c.l.b16 %v477
      %v508 = vpack.c.b16 %v496, %v495
      %v509 = vpack.c.b16 %v498, %v497
      %v510 = vpack.c.b16 %v500, %v499
      %v511 = vpack.c.b16 %v502, %v501
      %v512 = vpack.c.b16 %v504, %v503
      %v513 = vpack.c.b16 %v506, %v505
      %v514 = vpack.c.b16 %v507, %v507
      %v519 = vunpack.c.l.b16 %v478
      %v520 = vunpack.c.l.b16 %v479
      %v521 = vunpack.c.l.b16 %v480
      %v522 = vunpack.c.l.b16 %v481
      %v523 = vpack.c.b16 %v520, %v519
      %v524 = vpack.c.b16 %v522, %v521
      %vm527 = vcmask 261120
      %v529 = vsel %vm527, %v508, 0
      %v532 = vsel %vm527, %v509, 0
      %v535 = vsel %vm527, %v510, 0
      %v538 = vsel %vm527, %v511, 0
      %v541 = vsel %vm527, %v512, 0
      %v544 = vsel %vm527, %v513, 0
      %v547 = vsel %vm527, %v514, 0
      %549 = vmatprep.subr.bf16.mxu0 0
      %550 = vmatpush1.bf16.msra.mxu0 %v523
      %551 = vmatprep.subr.bf16.mxu0 0
      %552 = vmatpush1.bf16.msra.mxu0 %v524
      %553 = vmatprep.subr.bf16.mxu0 0
      %554 = vmatpush1.bf16.msra.mxu0 0
      %555 = vmatprep.subr.bf16.mxu0 0
      %556 = vmatpush1.bf16.msra.mxu0 0
      %557 = vmatprep.subr.bf16.mxu0 0
      %558 = vmatpush1.bf16.msra.mxu0 0
      %559 = vmatprep.subr.bf16.mxu0 0
      %560 = vmatpush1.bf16.msra.mxu0 0
      %561 = vmatprep.subr.bf16.mxu0 0
      %562 = vmatpush1.bf16.msra.mxu0 0
      %563 = vmatprep.subr.bf16.mxu0 0
      %564 = vmatpush1.bf16.msra.mxu0 0
      %565 = vmatprep.subr.bf16.mxu0 0
      %566 = vmatpush1.bf16.msra.mxu0 0
      %567 = vmatprep.subr.bf16.mxu0 0
      %568 = vmatpush1.bf16.msra.mxu0 0
      %569 = vmatprep.subr.bf16.mxu0 0
      %570 = vmatpush1.bf16.msra.mxu0 0
      %571 = vmatprep.subr.bf16.mxu0 0
      %572 = vmatpush1.bf16.msra.mxu0 0
      %573 = vmatprep.subr.bf16.mxu0 0
      %574 = vmatpush1.bf16.msra.mxu0 0
      %575 = vmatprep.subr.bf16.mxu0 0
      %576 = vmatpush1.bf16.msra.mxu0 0
      %577 = vmatprep.subr.bf16.mxu0 0
      %578 = vmatpush1.bf16.msra.mxu0 0
      %579 = vmatprep.subr.bf16.mxu0 0
      %580 = vmatpush1.bf16.msra.mxu0 0
      %581 = vmatprep.mubr.bf16.mxu0 0
      %582 = vmatmul.mubr.bf16.gmra.mrb[0].mxu0 %v529
      %v583 = vpop.f32.mrb[0].mxu0
      %v584 = vadd.f32 0.0, %v583
      %v585 = vpop.f32.mrb[0].mxu0
      %v586 = vpop.f32.mrb[0].mxu0
      %v587 = vadd.f32 0.0, %v586
      %v588 = vpop.f32.mrb[0].mxu0
      %589 = vmatprep.mubr.bf16.mxu0 0
      %590 = vmatmul.mubr.bf16.gmra.mrb[0].mxu0 %v532
      %v591 = vpop.f32.mrb[0].mxu0
      %v592 = vadd.f32 0.0, %v591
      %v593 = vpop.f32.mrb[0].mxu0
      %v594 = vpop.f32.mrb[0].mxu0
      %v595 = vadd.f32 0.0, %v594
      %v596 = vpop.f32.mrb[0].mxu0
      %597 = vmatprep.mubr.bf16.mxu0 0
      %598 = vmatmul.mubr.bf16.gmra.mrb[0].mxu0 %v535
      %v599 = vpop.f32.mrb[0].mxu0
      %v600 = vadd.f32 0.0, %v599
      %v601 = vpop.f32.mrb[0].mxu0
      %v602 = vpop.f32.mrb[0].mxu0
      %v603 = vadd.f32 0.0, %v602
      %v604 = vpop.f32.mrb[0].mxu0
      %605 = vmatprep.mubr.bf16.mxu0 0
      %606 = vmatmul.mubr.bf16.gmra.mrb[0].mxu0 %v538
      %v607 = vpop.f32.mrb[0].mxu0
      %v608 = vadd.f32 0.0, %v607
      %v609 = vpop.f32.mrb[0].mxu0
      %v610 = vpop.f32.mrb[0].mxu0
      %v611 = vadd.f32 0.0, %v610
      %v612 = vpop.f32.mrb[0].mxu0
      %613 = vmatprep.mubr.bf16.mxu0 0
      %614 = vmatmul.mubr.bf16.gmra.mrb[0].mxu0 %v541
      %v615 = vpop.f32.mrb[0].mxu0
      %v616 = vadd.f32 0.0, %v615
      %v617 = vpop.f32.mrb[0].mxu0
      %v618 = vpop.f32.mrb[0].mxu0
      %v619 = vadd.f32 0.0, %v618
      %v620 = vpop.f32.mrb[0].mxu0
      %621 = vmatprep.mubr.bf16.mxu0 0
      %622 = vmatmul.mubr.bf16.gmra.mrb[0].mxu0 %v544
      %v623 = vpop.f32.mrb[0].mxu0
      %v624 = vadd.f32 0.0, %v623
      %v625 = vpop.f32.mrb[0].mxu0
      %v626 = vpop.f32.mrb[0].mxu0
      %v627 = vadd.f32 0.0, %v626
      %v628 = vpop.f32.mrb[0].mxu0
      %629 = vmatprep.mubr.bf16.mxu0 0
      %630 = vmatmul.mubr.bf16.gmra.mrb[0].mxu0 %v547
      %v631 = vpop.f32.mrb[0].mxu0
      %v632 = vadd.f32 0.0, %v631
      %v633 = vpop.f32.mrb[0].mxu0
      %v634 = vpop.f32.mrb[0].mxu0
      %v635 = vpop.f32.mrb[0].mxu0
      %636 = vdwg.mxu0
      %v650 = vunpack.c.l.b16 %v448
      %v651 = vunpack.c.l.b16 %v449
      %v652 = vunpack.c.l.b16 %v450
      %v653 = vunpack.c.l.b16 %v451
      %v654 = vunpack.c.l.b16 %v452
      %v655 = vunpack.c.l.b16 %v453
      %v656 = vunpack.c.l.b16 %v454
      %v657 = vunpack.c.l.b16 %v455
      %v658 = vunpack.c.l.b16 %v456
      %v659 = vunpack.c.l.b16 %v457
      %v660 = vunpack.c.l.b16 %v458
      %v661 = vunpack.c.l.b16 %v459
      %v662 = vunpack.c.l.b16 %v460
      %v663 = vpack.c.b16 %v651, %v650
      %v664 = vpack.c.b16 %v653, %v652
      %v665 = vpack.c.b16 %v655, %v654
      %v666 = vpack.c.b16 %v657, %v656
      %v667 = vpack.c.b16 %v659, %v658
      %v668 = vpack.c.b16 %v661, %v660
      %v669 = vpack.c.b16 %v662, %v662
      %v674 = vunpack.c.l.b16 %v461
      %v675 = vunpack.c.l.b16 %v462
      %v676 = vunpack.c.l.b16 %v463
      %v677 = vunpack.c.l.b16 %v464
      %v678 = vpack.c.b16 %v675, %v674
      %v679 = vpack.c.b16 %v677, %v676
      %v683 = vsel %vm527, %v663, 0
      %v686 = vsel %vm527, %v664, 0
      %v689 = vsel %vm527, %v665, 0
      %v692 = vsel %vm527, %v666, 0
      %v695 = vsel %vm527, %v667, 0
      %v698 = vsel %vm527, %v668, 0
      %v701 = vsel %vm527, %v669, 0
      %703 = vmatprep.subr.bf16.mxu0 0
      %704 = vmatpush1.bf16.msra.mxu0 %v678
      %705 = vmatprep.subr.bf16.mxu0 0
      %706 = vmatpush1.bf16.msra.mxu0 %v679
      %707 = vmatprep.subr.bf16.mxu0 0
      %708 = vmatpush1.bf16.msra.mxu0 0
      %709 = vmatprep.subr.bf16.mxu0 0
      %710 = vmatpush1.bf16.msra.mxu0 0
      %711 = vmatprep.subr.bf16.mxu0 0
      %712 = vmatpush1.bf16.msra.mxu0 0
      %713 = vmatprep.subr.bf16.mxu0 0
      %714 = vmatpush1.bf16.msra.mxu0 0
      %715 = vmatprep.subr.bf16.mxu0 0
      %716 = vmatpush1.bf16.msra.mxu0 0
      %717 = vmatprep.subr.bf16.mxu0 0
      %718 = vmatpush1.bf16.msra.mxu0 0
      %719 = vmatprep.subr.bf16.mxu0 0
      %720 = vmatpush1.bf16.msra.mxu0 0
      %721 = vmatprep.subr.bf16.mxu0 0
      %722 = vmatpush1.bf16.msra.mxu0 0
      %723 = vmatprep.subr.bf16.mxu0 0
      %724 = vmatpush1.bf16.msra.mxu0 0
      %725 = vmatprep.subr.bf16.mxu0 0
      %726 = vmatpush1.bf16.msra.mxu0 0
      %727 = vmatprep.subr.bf16.mxu0 0
      %728 = vmatpush1.bf16.msra.mxu0 0
      %729 = vmatprep.subr.bf16.mxu0 0
      %730 = vmatpush1.bf16.msra.mxu0 0
      %731 = vmatprep.subr.bf16.mxu0 0
      %732 = vmatpush1.bf16.msra.mxu0 0
      %733 = vmatprep.subr.bf16.mxu0 0
      %734 = vmatpush1.bf16.msra.mxu0 0
      %735 = vmatprep.mubr.bf16.mxu0 0
      %736 = vmatmul.mubr.bf16.gmra.mrb[0].mxu0 %v683
      %v737 = vpop.f32.mrb[0].mxu0
      %v738 = vadd.f32 %v584, %v737
      %v739 = vpop.f32.mrb[0].mxu0
      %v740 = vpop.f32.mrb[0].mxu0
      %v741 = vadd.f32 %v587, %v740
      %v742 = vpop.f32.mrb[0].mxu0
      %743 = vmatprep.mubr.bf16.mxu0 0
      %744 = vmatmul.mubr.bf16.gmra.mrb[0].mxu0 %v686
      %v745 = vpop.f32.mrb[0].mxu0
      %v746 = vadd.f32 %v592, %v745
      %v747 = vpop.f32.mrb[0].mxu0
      %v748 = vpop.f32.mrb[0].mxu0
      %v749 = vadd.f32 %v595, %v748
      %v750 = vpop.f32.mrb[0].mxu0
      %751 = vmatprep.mubr.bf16.mxu0 0
      %752 = vmatmul.mubr.bf16.gmra.mrb[0].mxu0 %v689
      %v753 = vpop.f32.mrb[0].mxu0
      %v754 = vadd.f32 %v600, %v753
      %v755 = vpop.f32.mrb[0].mxu0
      %v756 = vpop.f32.mrb[0].mxu0
      %v757 = vadd.f32 %v603, %v756
      %v758 = vpop.f32.mrb[0].mxu0
      %759 = vmatprep.mubr.bf16.mxu0 0
      %760 = vmatmul.mubr.bf16.gmra.mrb[0].mxu0 %v692
      %v761 = vpop.f32.mrb[0].mxu0
      %v762 = vadd.f32 %v608, %v761
      %v763 = vpop.f32.mrb[0].mxu0
      %v764 = vpop.f32.mrb[0].mxu0
      %v765 = vadd.f32 %v611, %v764
      %v766 = vpop.f32.mrb[0].mxu0
      %767 = vmatprep.mubr.bf16.mxu0 0
      %768 = vmatmul.mubr.bf16.gmra.mrb[0].mxu0 %v695
      %v769 = vpop.f32.mrb[0].mxu0
      %v770 = vadd.f32 %v616, %v769
      %v771 = vpop.f32.mrb[0].mxu0
      %v772 = vpop.f32.mrb[0].mxu0
      %v773 = vadd.f32 %v619, %v772
      %v774 = vpop.f32.mrb[0].mxu0
      %775 = vmatprep.mubr.bf16.mxu0 0
      %776 = vmatmul.mubr.bf16.gmra.mrb[0].mxu0 %v698
      %v777 = vpop.f32.mrb[0].mxu0
      %v778 = vadd.f32 %v624, %v777
      %v779 = vpop.f32.mrb[0].mxu0
      %v780 = vpop.f32.mrb[0].mxu0
      %v781 = vadd.f32 %v627, %v780
      %v782 = vpop.f32.mrb[0].mxu0
      %783 = vmatprep.mubr.bf16.mxu0 0
      %784 = vmatmul.mubr.bf16.gmra.mrb[0].mxu0 %v701
      %v785 = vpop.f32.mrb[0].mxu0
      %v786 = vadd.f32 %v632, %v785
      %v787 = vpop.f32.mrb[0].mxu0
      %v788 = vpop.f32.mrb[0].mxu0
      %v789 = vpop.f32.mrb[0].mxu0
      %790 = vdwg.mxu0
      %v791 = vpack.c.bf16 %v436, %v435
      %v792 = vpack.c.bf16 %v438, %v437
      %v793 = vpack.c.bf16 %v440, %v439
      %v794 = vpack.c.bf16 %v442, %v441
      %v795 = vpack.c.bf16 %v444, %v443
      %v796 = vpack.c.bf16 %v446, %v445
      %v797 = vpack.c.bf16 %v447, %v447
      %v798 = vld [vmem:[%s5] sm:$0xf]
      %v799 = vld [vmem:[%s5 + $0x4] sm:$0xf]
      %v800 = vld [vmem:[%s5 + $0x8] sm:$0xf]
      %v801 = vld [vmem:[%s5 + $0xc] sm:$0xf]
      %v806 = vunpack.c.l.b16 %v798
      %v807 = vunpack.c.l.b16 %v799
      %v808 = vunpack.c.l.b16 %v800
      %v809 = vunpack.c.l.b16 %v801
      %v810 = vpack.c.b16 %v807, %v806
      %v811 = vpack.c.b16 %v809, %v808
      %v815 = vsel %vm527, %v791, 0
      %v818 = vsel %vm527, %v792, 0
      %v821 = vsel %vm527, %v793, 0
      %v824 = vsel %vm527, %v794, 0
      %v827 = vsel %vm527, %v795, 0
      %v830 = vsel %vm527, %v796, 0
      %v833 = vsel %vm527, %v797, 0
      %835 = vmatprep.subr.bf16.mxu0 0
      %836 = vmatpush1.bf16.msra.mxu0 %v810
      %837 = vmatprep.subr.bf16.mxu0 0
      %838 = vmatpush1.bf16.msra.mxu0 %v811
      %839 = vmatprep.subr.bf16.mxu0 0
      %840 = vmatpush1.bf16.msra.mxu0 0
      %841 = vmatprep.subr.bf16.mxu0 0
      %842 = vmatpush1.bf16.msra.mxu0 0
      %843 = vmatprep.subr.bf16.mxu0 0
      %844 = vmatpush1.bf16.msra.mxu0 0
      %845 = vmatprep.subr.bf16.mxu0 0
      %846 = vmatpush1.bf16.msra.mxu0 0
      %847 = vmatprep.subr.bf16.mxu0 0
      %848 = vmatpush1.bf16.msra.mxu0 0
      %849 = vmatprep.subr.bf16.mxu0 0
      %850 = vmatpush1.bf16.msra.mxu0 0
      %851 = vmatprep.subr.bf16.mxu0 0
      %852 = vmatpush1.bf16.msra.mxu0 0
      %853 = vmatprep.subr.bf16.mxu0 0
      %854 = vmatpush1.bf16.msra.mxu0 0
      %855 = vmatprep.subr.bf16.mxu0 0
      %856 = vmatpush1.bf16.msra.mxu0 0
      %857 = vmatprep.subr.bf16.mxu0 0
      %858 = vmatpush1.bf16.msra.mxu0 0
      %859 = vmatprep.subr.bf16.mxu0 0
      %860 = vmatpush1.bf16.msra.mxu0 0
      %861 = vmatprep.subr.bf16.mxu0 0
      %862 = vmatpush1.bf16.msra.mxu0 0
      %863 = vmatprep.subr.bf16.mxu0 0
      %864 = vmatpush1.bf16.msra.mxu0 0
      %865 = vmatprep.subr.bf16.mxu0 0
      %866 = vmatpush1.bf16.msra.mxu0 0
      %867 = vmatprep.mubr.bf16.mxu0 0
      %868 = vmatmul.mubr.bf16.gmra.mrb[0].mxu0 %v815
      %v869 = vpop.f32.mrb[0].mxu0
      %v870 = vadd.f32 0.0, %v869
      %v871 = vpop.f32.mrb[0].mxu0
      %v872 = vpop.f32.mrb[0].mxu0
      %v873 = vadd.f32 0.0, %v872
      %v874 = vpop.f32.mrb[0].mxu0
      %875 = vmatprep.mubr.bf16.mxu0 0
      %876 = vmatmul.mubr.bf16.gmra.mrb[0].mxu0 %v818
      %v877 = vpop.f32.mrb[0].mxu0
      %v878 = vadd.f32 0.0, %v877
      %v879 = vpop.f32.mrb[0].mxu0
      %v880 = vpop.f32.mrb[0].mxu0
      %v881 = vadd.f32 0.0, %v880
      %v882 = vpop.f32.mrb[0].mxu0
      %883 = vmatprep.mubr.bf16.mxu0 0
      %884 = vmatmul.mubr.bf16.gmra.mrb[0].mxu0 %v821
      %v885 = vpop.f32.mrb[0].mxu0
      %v886 = vadd.f32 0.0, %v885
      %v887 = vpop.f32.mrb[0].mxu0
      %v888 = vpop.f32.mrb[0].mxu0
      %v889 = vadd.f32 0.0, %v888
      %v890 = vpop.f32.mrb[0].mxu0
      %891 = vmatprep.mubr.bf16.mxu0 0
      %892 = vmatmul.mubr.bf16.gmra.mrb[0].mxu0 %v824
      %v893 = vpop.f32.mrb[0].mxu0
      %v894 = vadd.f32 0.0, %v893
      %v895 = vpop.f32.mrb[0].mxu0
      %v896 = vpop.f32.mrb[0].mxu0
      %v897 = vadd.f32 0.0, %v896
      %v898 = vpop.f32.mrb[0].mxu0
      %899 = vmatprep.mubr.bf16.mxu0 0
      %900 = vmatmul.mubr.bf16.gmra.mrb[0].mxu0 %v827
      %v901 = vpop.f32.mrb[0].mxu0
      %v902 = vadd.f32 0.0, %v901
      %v903 = vpop.f32.mrb[0].mxu0
      %v904 = vpop.f32.mrb[0].mxu0
      %v905 = vadd.f32 0.0, %v904
      %v906 = vpop.f32.mrb[0].mxu0
      %907 = vmatprep.mubr.bf16.mxu0 0
      %908 = vmatmul.mubr.bf16.gmra.mrb[0].mxu0 %v830
      %v909 = vpop.f32.mrb[0].mxu0
      %v910 = vadd.f32 0.0, %v909
      %v911 = vpop.f32.mrb[0].mxu0
      %v912 = vpop.f32.mrb[0].mxu0
      %v913 = vadd.f32 0.0, %v912
      %v914 = vpop.f32.mrb[0].mxu0
      %915 = vmatprep.mubr.bf16.mxu0 0
      %916 = vmatmul.mubr.bf16.gmra.mrb[0].mxu0 %v833
      %v917 = vpop.f32.mrb[0].mxu0
      %v918 = vadd.f32 0.0, %v917
      %v919 = vpop.f32.mrb[0].mxu0
      %v920 = vpop.f32.mrb[0].mxu0
      %v921 = vpop.f32.mrb[0].mxu0
      %922 = vdwg.mxu0
      %v923 = vadd.f32 %v738, %v870
      %v924 = vadd.f32 %v741, %v873
      %v925 = vadd.f32 %v746, %v878
      %v926 = vadd.f32 %v749, %v881
      %v927 = vadd.f32 %v754, %v886
      %v928 = vadd.f32 %v757, %v889
      %v929 = vadd.f32 %v762, %v894
      %v930 = vadd.f32 %v765, %v897
      %v931 = vadd.f32 %v770, %v902
      %v932 = vadd.f32 %v773, %v905
      %v933 = vadd.f32 %v778, %v910
      %v934 = vadd.f32 %v781, %v913
      %v935 = vadd.f32 %v786, %v918
      %v936 = vld [vmem:[%s6] sm:$0x1]
      %v938 = vlaneseq
      %v939 = vshrl.u32 %v938, 7
      %v940 = vsub.s32 0, %v939
      %v941 = vrot.slane %v936, %v940
      %v943 = vadd.f32 %v923, %v941
      %v944 = vadd.f32 %v924, %v941
      %v945 = vadd.f32 %v925, %v941
      %v946 = vadd.f32 %v926, %v941
      %v947 = vadd.f32 %v927, %v941
      %v948 = vadd.f32 %v928, %v941
      %v949 = vadd.f32 %v929, %v941
      %v950 = vadd.f32 %v930, %v941
      %v951 = vadd.f32 %v931, %v941
      %v952 = vadd.f32 %v932, %v941
      %v953 = vadd.f32 %v933, %v941
      %v954 = vadd.f32 %v934, %v941
      %v955 = vadd.f32 %v935, %v941
      %v956 = vmax.f32 %v943, 0.0
      %v957 = vmax.f32 %v944, 0.0
      %v958 = vmax.f32 %v945, 0.0
      %v959 = vmax.f32 %v946, 0.0
      %v960 = vmax.f32 %v947, 0.0
      %v961 = vmax.f32 %v948, 0.0
      %v962 = vmax.f32 %v949, 0.0
      %v963 = vmax.f32 %v950, 0.0
      %v964 = vmax.f32 %v951, 0.0
      %v965 = vmax.f32 %v952, 0.0
      %v966 = vmax.f32 %v953, 0.0
      %v967 = vmax.f32 %v954, 0.0
      %v968 = vmax.f32 %v955, 0.0
      %v969 = vpack.c.bf16 %v957, %v956
      %v970 = vpack.c.bf16 %v959, %v958
      %v971 = vpack.c.bf16 %v961, %v960
      %v972 = vpack.c.bf16 %v963, %v962
      %v973 = vpack.c.bf16 %v965, %v964
      %v974 = vpack.c.bf16 %v967, %v966
      %v975 = vpack.c.bf16 %v968, %v968
      %v976 = vld [vmem:[%s7] sm:$0xf]
      %v977 = vld [vmem:[%s7 + $0x4] sm:$0xf]
      %v978 = vld [vmem:[%s7 + $0x8] sm:$0xf]
      %v979 = vld [vmem:[%s7 + $0xc] sm:$0xf]
      %v980 = vld [vmem:[%s7 + $0x10] sm:$0xf]
      %v981 = vld [vmem:[%s7 + $0x14] sm:$0xf]
      %v982 = vld [vmem:[%s7 + $0x18] sm:$0xf]
      %v983 = vld [vmem:[%s7 + $0x1c] sm:$0xf]
      %v984 = vld [vmem:[%s8] sm:$0x1]
      %v986 = vlaneseq
      %v987 = vshrl.u32 %v986, 7
      %v988 = vsub.s32 0, %v987
      %v989 = vrot.slane %v984, %v988
      %v999 = vunpack.c.l.b16 %v976
      %v1000 = vunpack.c.l.b16 %v977
      %v1001 = vunpack.c.l.b16 %v978
      %v1002 = vunpack.c.l.b16 %v979
      %v1003 = vunpack.c.l.b16 %v980
      %v1004 = vunpack.c.l.b16 %v981
      %v1005 = vunpack.c.l.b16 %v982
      %v1006 = vunpack.c.l.b16 %v983
      %v1007 = vpack.c.b16 %v1000, %v999
      %v1008 = vpack.c.b16 %v1002, %v1001
      %v1009 = vpack.c.b16 %v1004, %v1003
      %v1010 = vpack.c.b16 %v1006, %v1005
      %vm1015 = vcmask 523264
      %v1017 = vsel %vm1015, %v969, 0
      %v1020 = vsel %vm1015, %v970, 0
      %v1023 = vsel %vm1015, %v971, 0
      %v1026 = vsel %vm1015, %v972, 0
      %v1029 = vsel %vm1015, %v973, 0
      %v1032 = vsel %vm1015, %v974, 0
      %v1035 = vsel %vm1015, %v975, 0
      %1037 = vmatprep.subr.bf16.mxu0 0
      %1038 = vmatpush1.bf16.msra.mxu0 %v1007
      %1039 = vmatprep.subr.bf16.mxu0 0
      %1040 = vmatpush1.bf16.msra.mxu0 %v1008
      %1041 = vmatprep.subr.bf16.mxu0 0
      %1042 = vmatpush1.bf16.msra.mxu0 %v1009
      %1043 = vmatprep.subr.bf16.mxu0 0
      %1044 = vmatpush1.bf16.msra.mxu0 %v1010
      %1045 = vmatprep.subr.bf16.mxu0 0
      %1046 = vmatpush1.bf16.msra.mxu0 0
      %1047 = vmatprep.subr.bf16.mxu0 0
      %1048 = vmatpush1.bf16.msra.mxu0 0
      %1049 = vmatprep.subr.bf16.mxu0 0
      %1050 = vmatpush1.bf16.msra.mxu0 0
      %1051 = vmatprep.subr.bf16.mxu0 0
      %1052 = vmatpush1.bf16.msra.mxu0 0
      %1053 = vmatprep.subr.bf16.mxu0 0
      %1054 = vmatpush1.bf16.msra.mxu0 0
      %1055 = vmatprep.subr.bf16.mxu0 0
      %1056 = vmatpush1.bf16.msra.mxu0 0
      %1057 = vmatprep.subr.bf16.mxu0 0
      %1058 = vmatpush1.bf16.msra.mxu0 0
      %1059 = vmatprep.subr.bf16.mxu0 0
      %1060 = vmatpush1.bf16.msra.mxu0 0
      %1061 = vmatprep.subr.bf16.mxu0 0
      %1062 = vmatpush1.bf16.msra.mxu0 0
      %1063 = vmatprep.subr.bf16.mxu0 0
      %1064 = vmatpush1.bf16.msra.mxu0 0
      %1065 = vmatprep.subr.bf16.mxu0 0
      %1066 = vmatpush1.bf16.msra.mxu0 0
      %1067 = vmatprep.subr.bf16.mxu0 0
      %1068 = vmatpush1.bf16.msra.mxu0 0
      %1069 = vmatprep.mubr.bf16.mxu0 0
      %1070 = vmatmul.mubr.bf16.gmra.mrb[0].mxu0 %v1017
      %v1071 = vpop.f32.mrb[0].mxu0
      %v1072 = vadd.f32 %v989, %v1071
      %v1073 = vpop.f32.mrb[0].mxu0
      %v1074 = vpop.f32.mrb[0].mxu0
      %v1075 = vadd.f32 %v989, %v1074
      %v1076 = vpop.f32.mrb[0].mxu0
      %1077 = vmatprep.mubr.bf16.mxu0 0
      %1078 = vmatmul.mubr.bf16.gmra.mrb[0].mxu0 %v1020
      %v1079 = vpop.f32.mrb[0].mxu0
      %v1080 = vadd.f32 %v989, %v1079
      %v1081 = vpop.f32.mrb[0].mxu0
      %v1082 = vpop.f32.mrb[0].mxu0
      %v1083 = vadd.f32 %v989, %v1082
      %v1084 = vpop.f32.mrb[0].mxu0
      %1085 = vmatprep.mubr.bf16.mxu0 0
      %1086 = vmatmul.mubr.bf16.gmra.mrb[0].mxu0 %v1023
      %v1087 = vpop.f32.mrb[0].mxu0
      %v1088 = vadd.f32 %v989, %v1087
      %v1089 = vpop.f32.mrb[0].mxu0
      %v1090 = vpop.f32.mrb[0].mxu0
      %v1091 = vadd.f32 %v989, %v1090
      %v1092 = vpop.f32.mrb[0].mxu0
      %1093 = vmatprep.mubr.bf16.mxu0 0
      %1094 = vmatmul.mubr.bf16.gmra.mrb[0].mxu0 %v1026
      %v1095 = vpop.f32.mrb[0].mxu0
      %v1096 = vadd.f32 %v989, %v1095
      %v1097 = vpop.f32.mrb[0].mxu0
      %v1098 = vpop.f32.mrb[0].mxu0
      %v1099 = vadd.f32 %v989, %v1098
      %v1100 = vpop.f32.mrb[0].mxu0
      %1101 = vmatprep.mubr.bf16.mxu0 0
      %1102 = vmatmul.mubr.bf16.gmra.mrb[0].mxu0 %v1029
      %v1103 = vpop.f32.mrb[0].mxu0
      %v1104 = vadd.f32 %v989, %v1103
      %v1105 = vpop.f32.mrb[0].mxu0
      %v1106 = vpop.f32.mrb[0].mxu0
      %v1107 = vadd.f32 %v989, %v1106
      %v1108 = vpop.f32.mrb[0].mxu0
      %1109 = vmatprep.mubr.bf16.mxu0 0
      %1110 = vmatmul.mubr.bf16.gmra.mrb[0].mxu0 %v1032
      %v1111 = vpop.f32.mrb[0].mxu0
      %v1112 = vadd.f32 %v989, %v1111
      %v1113 = vpop.f32.mrb[0].mxu0
      %v1114 = vpop.f32.mrb[0].mxu0
      %v1115 = vadd.f32 %v989, %v1114
      %v1116 = vpop.f32.mrb[0].mxu0
      %1117 = vmatprep.mubr.bf16.mxu0 0
      %1118 = vmatmul.mubr.bf16.gmra.mrb[0].mxu0 %v1035
      %v1119 = vpop.f32.mrb[0].mxu0
      %v1120 = vadd.f32 %v989, %v1119
      %v1121 = vpop.f32.mrb[0].mxu0
      %v1122 = vpop.f32.mrb[0].mxu0
      %v1123 = vpop.f32.mrb[0].mxu0
      %1124 = vdwg.mxu0
      %v1125 = vsel %vm527, %v1072, 0.0
      %1126 = vadd.xlane.f32.xlu0 %v1125
      %v1127 = vpop.xlane.xlu0 %1126
      %v1128 = vsel %vm527, %v1075, 0.0
      %1129 = vadd.xlane.f32.xlu0 %v1128
      %v1130 = vpop.xlane.xlu0 %1129
      %v1131 = vsel %vm527, %v1080, 0.0
      %1132 = vadd.xlane.f32.xlu0 %v1131
      %v1133 = vpop.xlane.xlu0 %1132
      %v1134 = vsel %vm527, %v1083, 0.0
      %1135 = vadd.xlane.f32.xlu0 %v1134
      %v1136 = vpop.xlane.xlu0 %1135
      %v1137 = vsel %vm527, %v1088, 0.0
      %1138 = vadd.xlane.f32.xlu0 %v1137
      %v1139 = vpop.xlane.xlu0 %1138
      %v1140 = vsel %vm527, %v1091, 0.0
      %1141 = vadd.xlane.f32.xlu0 %v1140
      %v1142 = vpop.xlane.xlu0 %1141
      %v1143 = vsel %vm527, %v1096, 0.0
      %1144 = vadd.xlane.f32.xlu0 %v1143
      %v1145 = vpop.xlane.xlu0 %1144
      %v1146 = vsel %vm527, %v1099, 0.0
      %1147 = vadd.xlane.f32.xlu0 %v1146
      %v1148 = vpop.xlane.xlu0 %1147
      %v1149 = vsel %vm527, %v1104, 0.0
      %1150 = vadd.xlane.f32.xlu0 %v1149
      %v1151 = vpop.xlane.xlu0 %1150
      %v1152 = vsel %vm527, %v1107, 0.0
      %1153 = vadd.xlane.f32.xlu0 %v1152
      %v1154 = vpop.xlane.xlu0 %1153
      %v1155 = vsel %vm527, %v1112, 0.0
      %1156 = vadd.xlane.f32.xlu0 %v1155
      %v1157 = vpop.xlane.xlu0 %1156
      %v1158 = vsel %vm527, %v1115, 0.0
      %1159 = vadd.xlane.f32.xlu0 %v1158
      %v1160 = vpop.xlane.xlu0 %1159
      %v1161 = vsel %vm527, %v1120, 0.0
      %1162 = vadd.xlane.f32.xlu0 %v1161
      %v1163 = vpop.xlane.xlu0 %1162
      %v1164 = vrcp.pop 32.0
      %v1165 = vmul.f32 %v1127, %v1164
      %v1166 = vmul.f32 %v1130, %v1164
      %v1167 = vmul.f32 %v1133, %v1164
      %v1168 = vmul.f32 %v1136, %v1164
      %v1169 = vmul.f32 %v1139, %v1164
      %v1170 = vmul.f32 %v1142, %v1164
      %v1171 = vmul.f32 %v1145, %v1164
      %v1172 = vmul.f32 %v1148, %v1164
      %v1173 = vmul.f32 %v1151, %v1164
      %v1174 = vmul.f32 %v1154, %v1164
      %v1175 = vmul.f32 %v1157, %v1164
      %v1176 = vmul.f32 %v1160, %v1164
      %v1177 = vmul.f32 %v1163, %v1164
      %v1178 = vsub.f32 %v1072, %v1165
      %v1179 = vsub.f32 %v1075, %v1166
      %v1180 = vsub.f32 %v1080, %v1167
      %v1181 = vsub.f32 %v1083, %v1168
      %v1182 = vsub.f32 %v1088, %v1169
      %v1183 = vsub.f32 %v1091, %v1170
      %v1184 = vsub.f32 %v1096, %v1171
      %v1185 = vsub.f32 %v1099, %v1172
      %v1186 = vsub.f32 %v1104, %v1173
      %v1187 = vsub.f32 %v1107, %v1174
      %v1188 = vsub.f32 %v1112, %v1175
      %v1189 = vsub.f32 %v1115, %v1176
      %v1190 = vsub.f32 %v1120, %v1177
      %v1191 = vmul.f32 %v1178, %v1178
      %v1192 = vmul.f32 %v1179, %v1179
      %v1193 = vmul.f32 %v1180, %v1180
      %v1194 = vmul.f32 %v1181, %v1181
      %v1195 = vmul.f32 %v1182, %v1182
      %v1196 = vmul.f32 %v1183, %v1183
      %v1197 = vmul.f32 %v1184, %v1184
      %v1198 = vmul.f32 %v1185, %v1185
      %v1199 = vmul.f32 %v1186, %v1186
      %v1200 = vmul.f32 %v1187, %v1187
      %v1201 = vmul.f32 %v1188, %v1188
      %v1202 = vmul.f32 %v1189, %v1189
      %v1203 = vmul.f32 %v1190, %v1190
      %v1204 = vsel %vm527, %v1191, 0.0
      %1205 = vadd.xlane.f32.xlu0 %v1204
      %v1206 = vpop.xlane.xlu0 %1205
      %v1207 = vsel %vm527, %v1192, 0.0
      %1208 = vadd.xlane.f32.xlu0 %v1207
      %v1209 = vpop.xlane.xlu0 %1208
      %v1210 = vsel %vm527, %v1193, 0.0
      %1211 = vadd.xlane.f32.xlu0 %v1210
      %v1212 = vpop.xlane.xlu0 %1211
      %v1213 = vsel %vm527, %v1194, 0.0
      %1214 = vadd.xlane.f32.xlu0 %v1213
      %v1215 = vpop.xlane.xlu0 %1214
      %v1216 = vsel %vm527, %v1195, 0.0
      %1217 = vadd.xlane.f32.xlu0 %v1216
      %v1218 = vpop.xlane.xlu0 %1217
      %v1219 = vsel %vm527, %v1196, 0.0
      %1220 = vadd.xlane.f32.xlu0 %v1219
      %v1221 = vpop.xlane.xlu0 %1220
      %v1222 = vsel %vm527, %v1197, 0.0
      %1223 = vadd.xlane.f32.xlu0 %v1222
      %v1224 = vpop.xlane.xlu0 %1223
      %v1225 = vsel %vm527, %v1198, 0.0
      %1226 = vadd.xlane.f32.xlu0 %v1225
      %v1227 = vpop.xlane.xlu0 %1226
      %v1228 = vsel %vm527, %v1199, 0.0
      %1229 = vadd.xlane.f32.xlu0 %v1228
      %v1230 = vpop.xlane.xlu0 %1229
      %v1231 = vsel %vm527, %v1200, 0.0
      %1232 = vadd.xlane.f32.xlu0 %v1231
      %v1233 = vpop.xlane.xlu0 %1232
      %v1234 = vsel %vm527, %v1201, 0.0
      %1235 = vadd.xlane.f32.xlu0 %v1234
      %v1236 = vpop.xlane.xlu0 %1235
      %v1237 = vsel %vm527, %v1202, 0.0
      %1238 = vadd.xlane.f32.xlu0 %v1237
      %v1239 = vpop.xlane.xlu0 %1238
      %v1240 = vsel %vm527, %v1203, 0.0
      %1241 = vadd.xlane.f32.xlu0 %v1240
      %v1242 = vpop.xlane.xlu0 %1241
      %v1243 = vmul.f32 %v1206, %v1164
      %v1244 = vmul.f32 %v1209, %v1164
      %v1245 = vmul.f32 %v1212, %v1164
      %v1246 = vmul.f32 %v1215, %v1164
      %v1247 = vmul.f32 %v1218, %v1164
      %v1248 = vmul.f32 %v1221, %v1164
      %v1249 = vmul.f32 %v1224, %v1164
      %v1250 = vmul.f32 %v1227, %v1164
      %v1251 = vmul.f32 %v1230, %v1164
      %v1252 = vmul.f32 %v1233, %v1164
      %v1253 = vmul.f32 %v1236, %v1164
      %v1254 = vmul.f32 %v1239, %v1164
      %v1255 = vmul.f32 %v1242, %v1164
      %v1256 = vadd.f32 %v1243, 1e-05
      %v1257 = vadd.f32 %v1244, 1e-05
      %v1258 = vadd.f32 %v1245, 1e-05
      %v1259 = vadd.f32 %v1246, 1e-05
      %v1260 = vadd.f32 %v1247, 1e-05
      %v1261 = vadd.f32 %v1248, 1e-05
      %v1262 = vadd.f32 %v1249, 1e-05
      %v1263 = vadd.f32 %v1250, 1e-05
      %v1264 = vadd.f32 %v1251, 1e-05
      %v1265 = vadd.f32 %v1252, 1e-05
      %v1266 = vadd.f32 %v1253, 1e-05
      %v1267 = vadd.f32 %v1254, 1e-05
      %v1268 = vadd.f32 %v1255, 1e-05
      %v1269 = vrsqrt.pop %v1256
      %v1270 = vrsqrt.pop %v1257
      %v1271 = vrsqrt.pop %v1258
      %v1272 = vrsqrt.pop %v1259
      %v1273 = vrsqrt.pop %v1260
      %v1274 = vrsqrt.pop %v1261
      %v1275 = vrsqrt.pop %v1262
      %v1276 = vrsqrt.pop %v1263
      %v1277 = vrsqrt.pop %v1264
      %v1278 = vrsqrt.pop %v1265
      %v1279 = vrsqrt.pop %v1266
      %v1280 = vrsqrt.pop %v1267
      %v1281 = vrsqrt.pop %v1268
      %v1282 = vmul.f32 %v1178, %v1269
      %v1283 = vmul.f32 %v1179, %v1270
      %v1284 = vmul.f32 %v1180, %v1271
      %v1285 = vmul.f32 %v1181, %v1272
      %v1286 = vmul.f32 %v1182, %v1273
      %v1287 = vmul.f32 %v1183, %v1274
      %v1288 = vmul.f32 %v1184, %v1275
      %v1289 = vmul.f32 %v1185, %v1276
      %v1290 = vmul.f32 %v1186, %v1277
      %v1291 = vmul.f32 %v1187, %v1278
      %v1292 = vmul.f32 %v1188, %v1279
      %v1293 = vmul.f32 %v1189, %v1280
      %v1294 = vmul.f32 %v1190, %v1281
      %v1295 = vld [vmem:[%s9] sm:$0x1]
      %v1297 = vlaneseq
      %v1298 = vshrl.u32 %v1297, 7
      %v1299 = vsub.s32 0, %v1298
      %v1300 = vrot.slane %v1295, %v1299
      %v1302 = vmul.f32 %v1282, %v1300
      %v1303 = vmul.f32 %v1283, %v1300
      %v1304 = vmul.f32 %v1284, %v1300
      %v1305 = vmul.f32 %v1285, %v1300
      %v1306 = vmul.f32 %v1286, %v1300
      %v1307 = vmul.f32 %v1287, %v1300
      %v1308 = vmul.f32 %v1288, %v1300
      %v1309 = vmul.f32 %v1289, %v1300
      %v1310 = vmul.f32 %v1290, %v1300
      %v1311 = vmul.f32 %v1291, %v1300
      %v1312 = vmul.f32 %v1292, %v1300
      %v1313 = vmul.f32 %v1293, %v1300
      %v1314 = vmul.f32 %v1294, %v1300
      %v1315 = vld [vmem:[%s10] sm:$0x1]
      %v1317 = vlaneseq
      %v1318 = vshrl.u32 %v1317, 7
      %v1319 = vsub.s32 0, %v1318
      %v1320 = vrot.slane %v1315, %v1319
      %v1322 = vadd.f32 %v1302, %v1320
      %v1323 = vadd.f32 %v1303, %v1320
      %v1324 = vadd.f32 %v1304, %v1320
      %v1325 = vadd.f32 %v1305, %v1320
      %v1326 = vadd.f32 %v1306, %v1320
      %v1327 = vadd.f32 %v1307, %v1320
      %v1328 = vadd.f32 %v1308, %v1320
      %v1329 = vadd.f32 %v1309, %v1320
      %v1330 = vadd.f32 %v1310, %v1320
      %v1331 = vadd.f32 %v1311, %v1320
      %v1332 = vadd.f32 %v1312, %v1320
      %v1333 = vadd.f32 %v1313, %v1320
      %v1334 = vadd.f32 %v1314, %v1320
      %v1335 = vadd.f32 %v435, %v1322
      %v1336 = vadd.f32 %v436, %v1323
      %v1337 = vadd.f32 %v437, %v1324
      %v1338 = vadd.f32 %v438, %v1325
      %v1339 = vadd.f32 %v439, %v1326
      %v1340 = vadd.f32 %v440, %v1327
      %v1341 = vadd.f32 %v441, %v1328
      %v1342 = vadd.f32 %v442, %v1329
      %v1343 = vadd.f32 %v443, %v1330
      %v1344 = vadd.f32 %v444, %v1331
      %v1345 = vadd.f32 %v445, %v1332
      %v1346 = vadd.f32 %v446, %v1333
      %v1347 = vadd.f32 %v447, %v1334
      %1348 = vst.msk [vmem:[%s432] sm:$0xff] %vm527, %v1335
      %1349 = vst.msk [vmem:[%s432 + $0x8] sm:$0xff] %vm527, %v1336
      %1350 = vst.msk [vmem:[%s432 + $0x10] sm:$0xff] %vm527, %v1337
      %1351 = vst.msk [vmem:[%s432 + $0x18] sm:$0xff] %vm527, %v1338
      %1352 = vst.msk [vmem:[%s432 + $0x20] sm:$0xff] %vm527, %v1339
      %1353 = vst.msk [vmem:[%s432 + $0x28] sm:$0xff] %vm527, %v1340
      %1354 = vst.msk [vmem:[%s432 + $0x30] sm:$0xff] %vm527, %v1341
      %1355 = vst.msk [vmem:[%s432 + $0x38] sm:$0xff] %vm527, %v1342
      %1356 = vst.msk [vmem:[%s432 + $0x40] sm:$0xff] %vm527, %v1343
      %1357 = vst.msk [vmem:[%s432 + $0x48] sm:$0xff] %vm527, %v1344
      %1358 = vst.msk [vmem:[%s432 + $0x50] sm:$0xff] %vm527, %v1345
      %1359 = vst.msk [vmem:[%s432 + $0x58] sm:$0xff] %vm527, %v1346
      %1360 = vst.msk [vmem:[%s432 + $0x60] sm:$0xff] %vm527, %v1347
      %s1361 = smul.u32 13, %s22
      %p1362 = scmp.lt.s32.totalorder %s1361, 25
      %s1363 = scalar_select %p1362, %s1361, 25
      %s1364 = smul.addr %s1363, 8
      %s1365 = scalar_lea.vmem %s11, %s1364
      // Predicated region
      $region65: #{edge_block.1} parent=63 // pred_check
        %p1366 = pneg %p286
      $region66: #{edge_block.1} parent=63 // pred_check_branch
        %1368 = sbr.rel (%p1366) target = $region68
      $region67: #{edge_block.1} parent=63 // pred_region
        %s1369 = smul.u32 13, %s22
      $region68: #{edge_block.1} parent=63 // pred_fallthru
        _
    $region64: #{edge_block.1} parent=5 // pred_fallthru
      _
    %p1370 = scmp.le.s32.totalorder 2, %s17
    // Predicated region
    $region69: #{edge_block.1} parent=5 // pred_check
      %p1371 = pneg %p1370
    $region70: #{edge_block.1} parent=5 // pred_check_branch
      %1373 = sbr.rel (%p1371) target = $region72
    $region71: #{edge_block.1} parent=5 // pred_region
      %s1374 = ssub.s32 %s17, 2
      // Predicated region
      $region73: #{edge_block.1} parent=71 // pred_check
        %p1375 = pneg %p292
      $region74: #{edge_block.1} parent=71 // pred_check_branch
        %1377 = sbr.rel (%p1375) target = $region76
      $region75: #{edge_block.1} parent=71 // pred_region
        %s1378 = smul.u32 13, %s23
        %p1379 = scmp.lt.s32.totalorder %s1378, 25
        %s1380 = scalar_select %p1379, %s1378, 25
        %s1381 = smul.addr %s1380, 8
        %s1382 = scalar_lea.vmem %s11, %s1381
      $region76: #{edge_block.1} parent=71 // pred_fallthru
        _
    $region72: #{edge_block.1} parent=5 // pred_fallthru
      _
  $region6: #{edge_block.1} parent=0 // loop_footer
    %s21 = sadd.s32 1, %s17
  $region7: #{edge_block.1} parent=0 // loop_footer_branch
    %16 = sbr.rel target = $region3
  $region8: #{edge_block.1} parent=0 // loop_exit
    _

</llo_original>
